<compile_context>
chip_gen: v7x
topology: tpu7x:2x2x1
jax: 0.10.0
libtpu: 0.0.40
codegen_flags: <defaults>
</compile_context>

<pallas_src>
import functools

import jax
import jax.numpy as jnp
from jax.experimental import pallas as pl
from jax.experimental.pallas import tpu as pltpu

BN_EPS = 1e-5
PAD = 128                        # lane-dense feature padding (one 128-lane vreg)
PAD2 = 2 * PAD                   # fused / combined tiles use 256 lanes
MATMUL_DTYPE = jnp.bfloat16      # bf16 MXU operands, f32 accumulation

# compile-time skip-path modes
SKIP_NONE, SKIP_ID, SKIP_PROJ = 0, 1, 2
_GROUP_ID = {"A": 0, "B": 1, "C": 2}   # (128,128) / (128,256) / (256,256)


# ----------------------------------------------------------------------------
# Single fused Pallas kernel: encoder -> {combined classifiers, decoder},
# all weights VMEM-resident, all activations in vregs/VMEM.
# Schedules are compile-time tuples of (group, w_idx, bias_row, relu, skip),
# so the Python loop fully unrolls and each layer is specialized at trace time.
# ----------------------------------------------------------------------------
def _fused_forward_kernel(x_ref, wa_ref, wb_ref, wc_ref, b_ref,
                          z_ref, cls_ref, rec_ref, *, enc, dec, cls):
    w_groups = (wa_ref, wb_ref, wc_ref)
    bias_tbl = b_ref[...]                       # (rows, 256) f32, tiny (4 vregs)

    def matmul(h, w):                           # bf16 MXU, f32 accumulation
        return jnp.dot(h.astype(w.dtype), w, preferred_element_type=jnp.float32)

    def run(h, schedule):
        for g, wi, bi, relu, skip in schedule:  # static unroll (13 layers total)
            w = w_groups[g][wi]                 # (K, N) bf16 tile
            y = matmul(h, w)                    # (TB, N) f32
            if skip == SKIP_PROJ:
                # fused ResidualLayerV2: main half = lanes [0:128],
                # skip-projection half = lanes [128:256]
                main = y[:, :PAD] + bias_tbl[bi:bi + 1, :PAD]
                if relu:
                    main = jnp.maximum(main, 0.0)
                h = main + y[:, PAD:]
            else:
                y = y + bias_tbl[bi:bi + 1, :y.shape[1]]
                if relu:
                    y = jnp.maximum(y, 0.0)
                if skip == SKIP_ID:             # ResidualLayer: VPU add
                    y = y + h
                h = y
        return h

    x = x_ref[...]
    z = run(x, enc)
    z_ref[...] = z
    cls_ref[...] = run(z, cls)                  # scan: lanes 0:128, type: 128:256
    rec_ref[...] = run(z, dec)


# ----------------------------------------------------------------------------
# Host-side parameter construction, BN folding, lane padding & packing.
# ----------------------------------------------------------------------------
def _linear_params(key, din, dout, bias=True):
    kw, kb = jax.random.split(key)
    bound = float(din) ** -0.5
    w = jax.random.uniform(kw, (din, dout), jnp.float32, -bound, bound)
    b = (jax.random.uniform(kb, (dout,), jnp.float32, -bound, bound)
         if bias else jnp.zeros((dout,), jnp.float32))
    return w, b


def _bn_affine(dim):
    # eval-mode BatchNorm1d with default buffers/params -> per-feature affine
    gamma = jnp.ones((dim,), jnp.float32)
    beta = jnp.zeros((dim,), jnp.float32)
    mean = jnp.zeros((dim,), jnp.float32)
    var = jnp.ones((dim,), jnp.float32)
    scale = gamma / jnp.sqrt(var + BN_EPS)
    shift = beta - mean * scale
    return scale, shift


def _fold_bn_pre(w, b, bn):     # y = (x*s + t) @ W + b
    s, t = bn
    return s[:, None] * w, jnp.dot(t, w) + b


def _fold_bn_post(w, b, bn):    # y = (x @ W + b)*s + t
    s, t = bn
    return w * s[None, :], b * s + t


def _pad_bias(b, lane_off=0):
    return jnp.zeros((PAD2,), jnp.float32).at[lane_off:lane_off + b.shape[0]].set(b)


def _plain(key, din, dout, *, bias=True, scale=1.0, bn_pre=None):
    w, b = _linear_params(key, din, dout, bias=bias)
    w, b = w * scale, b * scale
    if bn_pre is not None:
        w, b = _fold_bn_pre(w, b, bn_pre)
    wp = jnp.zeros((PAD, PAD), jnp.float32).at[:din, :dout].set(w)
    return dict(group="A", w=wp, b=_pad_bias(b), relu=False, skip=SKIP_NONE)


def _residual_v2(key, din, dout):
    # main Linear (BN-post folded) and bias-free skip projection fused along N
    k1, k2 = jax.random.split(key)
    w, b = _linear_params(k1, din, dout)
    w, b = _fold_bn_post(w, b, _bn_affine(dout))
    wskip, _ = _linear_params(k2, din, dout, bias=False)
    wp = (jnp.zeros((PAD, PAD2), jnp.float32)
          .at[:din, :dout].set(w)
          .at[:din, PAD:PAD + dout].set(wskip))
    return dict(group="B", w=wp, b=_pad_bias(b), relu=True, skip=SKIP_PROJ)


def _combined_head(key_s, key_t, num_hidden, nf_s, nf_t):
    # [BN(h) folded into Linear(h, nf)] for both classifiers packed along N
    ws, bs = _fold_bn_pre(*_linear_params(key_s, num_hidden, nf_s),
                          _bn_affine(num_hidden))
    wt, bt = _fold_bn_pre(*_linear_params(key_t, num_hidden, nf_t),
                          _bn_affine(num_hidden))
    wp = (jnp.zeros((PAD, PAD2), jnp.float32)
          .at[:num_hidden, :nf_s].set(ws)
          .at[:num_hidden, PAD:PAD + nf_t].set(wt))
    return dict(group="B", w=wp, b=_pad_bias(bs) + _pad_bias(bt, PAD),
                relu=False, skip=SKIP_NONE)


def _combined_residual(key_s, key_t, nf_s, nf_t, active_s, active_t):
    # Block-diagonal ResidualLayer for both classifiers.  An inactive branch
    # gets a zero block: out = h + relu(0) == h, i.e. an exact identity.
    wp = jnp.zeros((PAD2, PAD2), jnp.float32)
    b = jnp.zeros((PAD2,), jnp.float32)
    if active_s:
        ws, bs = _fold_bn_post(*_linear_params(key_s, nf_s, nf_s), _bn_affine(nf_s))
        wp = wp.at[:nf_s, :nf_s].set(ws)
        b = b.at[:nf_s].set(bs)
    if active_t:
        wt, bt = _fold_bn_post(*_linear_params(key_t, nf_t, nf_t), _bn_affine(nf_t))
        wp = wp.at[PAD:PAD + nf_t, PAD:PAD + nf_t].set(wt)
        b = b.at[PAD:PAD + nf_t].set(bt)
    return dict(group="C", w=wp, b=b, relu=True, skip=SKIP_ID)


def _combined_final(key_s, key_t, nf_s, nf_t, num_scans, num_types):
    ws, bs = _linear_params(key_s, nf_s, num_scans)
    wt, bt = _linear_params(key_t, nf_t, num_types)
    wp = (jnp.zeros((PAD2, PAD2), jnp.float32)
          .at[:nf_s, :num_scans].set(ws)
          .at[PAD:PAD + nf_t, PAD:PAD + num_types].set(wt))
    return dict(group="C", w=wp, b=_pad_bias(bs) + _pad_bias(bt, PAD),
                relu=False, skip=SKIP_NONE)


def build_params(key, input_shape, num_scans, num_types, num_feature, num_hidden,
                 nf_sc, nl_sc, nf_tc, nl_tc):
    assert max(input_shape, num_hidden, max(num_feature), nf_sc, nf_tc,
               num_scans, num_types) <= PAD, "feature dims must fit 128 lanes"
    dims = list(num_feature) + [num_hidden]
    keys = iter(jax.random.split(key, 64))

    # encoder = [latent_in (no bias)] + ResidualLayerV2(dims[i], dims[i+1]) * L
    encoder = [_plain(next(keys), input_shape, num_feature[0], bias=False)]
    encoder += [_residual_v2(next(keys), dims[i], dims[i + 1])
                for i in range(len(num_feature))]

    # decoder = [Linear(h,h)] + ResidualLayerV2(dims[-i-1], dims[-i-2]) * L
    #           + [Linear(nf[0], input_shape) with weight & bias scaled by 1e-3]
    decoder = [_plain(next(keys), num_hidden, num_hidden)]
    decoder += [_residual_v2(next(keys), dims[-i - 1], dims[-i - 2])
                for i in range(len(num_feature))]
    decoder += [_plain(next(keys), num_feature[0], input_shape, scale=1e-3)]

    # scan + type classifiers packed side-by-side along N
    n_res = max(nl_sc, nl_tc)
    classifier = [_combined_head(next(keys), next(keys), num_hidden, nf_sc, nf_tc)]
    classifier += [_combined_residual(next(keys), next(keys), nf_sc, nf_tc,
                                      i < nl_sc, i < nl_tc) for i in range(n_res)]
    classifier += [_combined_final(next(keys), next(keys), nf_sc, nf_tc,
                                   num_scans, num_types)]

    # ---- pack weights per shape-group, biases into one dense f32 table ----
    groups = {"A": [], "B": [], "C": []}
    biases, scheds = [], {}
    for name, layers in (("enc", encoder), ("dec", decoder), ("cls", classifier)):
        sched = []
        for L in layers:
            g = L["group"]
            wi = len(groups[g]); groups[g].append(L["w"])
            bi = len(biases);    biases.append(L["b"])
            sched.append((_GROUP_ID[g], wi, bi, bool(L["relu"]), int(L["skip"])))
        scheds[name] = tuple(sched)

    def stack(ws, shape):
        if not ws:
            ws = [jnp.zeros(shape, jnp.float32)]
        return jnp.stack(ws).astype(MATMUL_DTYPE)

    n_rows = -(-len(biases) // 8) * 8
    bias_tbl = (jnp.zeros((n_rows, PAD2), jnp.float32)
                .at[:len(biases)].set(jnp.stack(biases)))

    return dict(
        WA=stack(groups["A"], (PAD, PAD)),      # (nA, 128, 128) bf16
        WB=stack(groups["B"], (PAD, PAD2)),     # (nB, 128, 256) bf16
        WC=stack(groups["C"], (PAD2, PAD2)),    # (nC, 256, 256) bf16
        bias=bias_tbl,                          # (n_rows, 256) f32
        scheds=scheds,
        dims=dict(input=input_shape, hidden=num_hidden,
                  scans=num_scans, types=num_types),
    )


# ----------------------------------------------------------------------------
# Forward pass = one fused Pallas call.  Returns (z, y_scan, y_type, x_rec).
# ----------------------------------------------------------------------------
def autoencoder_forward(params, x, *, max_tile_b=512):
    B, din = x.shape
    tile_b = min(max_tile_b, -(-B // 8) * 8)          # sublane multiple of 8
    Bp = -(-B // tile_b) * tile_b
    xp = jnp.zeros((Bp, PAD), jnp.float32).at[:B, :din].set(x)

    sch = params["scheds"]
    kernel = functools.partial(_fused_forward_kernel,
                               enc=sch["enc"], dec=sch["dec"], cls=sch["cls"])

    def resident(a):   # grid-invariant block -> DMA'd once, stays VMEM-resident
        return pl.BlockSpec(a.shape, lambda *_: (0,) * a.ndim)

    def act(n):        # batch-tiled, lane-dense activation block
        return pl.BlockSpec((tile_b, n), lambda i: (i, 0))

    z_p, cls_p, rec_p = pl.pallas_call(
        kernel,
        grid=(Bp // tile_b,),
        out_shape=(jax.ShapeDtypeStruct((Bp, PAD), jnp.float32),
                   jax.ShapeDtypeStruct((Bp, PAD2), jnp.float32),
                   jax.ShapeDtypeStruct((Bp, PAD), jnp.float32)),
        in_specs=[act(PAD),
                  resident(params["WA"]), resident(params["WB"]),
                  resident(params["WC"]), resident(params["bias"])],
        out_specs=(act(PAD), act(PAD2), act(PAD)),
        compiler_params=pltpu.CompilerParams(
            dimension_semantics=("parallel",)),   # shards batch tiles over v7x's 2 TCs
    )(xp, params["WA"], params["WB"], params["WC"], params["bias"])

    d = params["dims"]
    return (z_p[:B, :d["hidden"]],
            cls_p[:B, :d["scans"]],
            cls_p[:B, PAD:PAD + d["types"]],
            rec_p[:B, :d["input"]])


# ----------------------------------------------------------------------------
# Pure-XLA replay of the identical folded/packed math (plumbing sanity check).
# ----------------------------------------------------------------------------
def _reference_forward(params, xp):
    W = (params["WA"], params["WB"], params["WC"])
    bias_tbl = params["bias"]

    def run(h, schedule):
        for g, wi, bi, relu, skip in schedule:
            w = W[g][wi]
            y = jnp.dot(h.astype(w.dtype), w, preferred_element_type=jnp.float32)
            if skip == SKIP_PROJ:
                main = y[:, :PAD] + bias_tbl[bi:bi + 1, :PAD]
                if relu:
                    main = jnp.maximum(main, 0.0)
                h = main + y[:, PAD:]
            else:
                y = y + bias_tbl[bi:bi + 1, :y.shape[1]]
                if relu:
                    y = jnp.maximum(y, 0.0)
                if skip == SKIP_ID:
                    y = y + h
                h = y
        return h

    sch = params["scheds"]
    z = run(xp, sch["enc"])
    return z, run(z, sch["cls"]), run(z, sch["dec"])


# ----------------------------------------------------------------------------
if __name__ == "__main__":
    key = jax.random.PRNGKey(0)
    kparams, kx = jax.random.split(key)

    B = 8
    input_shape = 80
    num_scans = 5
    num_types = 14
    num_feature = [64, 48, 32]
    num_hidden = 16
    nf_sc = 32
    nl_sc = 2
    nf_tc = 32
    nl_tc = 2

    params = build_params(kparams, input_shape, num_scans, num_types,
                          num_feature, num_hidden, nf_sc, nl_sc, nf_tc, nl_tc)
    x = jax.random.normal(kx, (B, input_shape), jnp.float32)

    z, y_scan, y_type, x_rec = autoencoder_forward(params, x)
    jax.block_until_ready((z, y_scan, y_type, x_rec))

    assert z.shape == (B, num_hidden)
    assert y_scan.shape == (B, num_scans)
    assert y_type.shape == (B, num_types)
    assert x_rec.shape == (B, input_shape)
    assert all(bool(jnp.all(jnp.isfinite(t))) for t in (z, y_scan, y_type, x_rec))

    # Plumbing sanity check: kernel must match a pure-XLA replay of the same
    # folded / packed math (bf16 operands, f32 accumulation).
    xp = jnp.zeros((B, PAD), jnp.float32).at[:, :input_shape].set(x)
    z_r, cls_r, rec_r = _reference_forward(params, xp)
    d = params["dims"]
    assert bool(jnp.allclose(z, z_r[:, :d["hidden"]], atol=1e-2, rtol=1e-2))
    assert bool(jnp.allclose(y_scan, cls_r[:, :d["scans"]], atol=1e-2, rtol=1e-2))
    assert bool(jnp.allclose(y_type, cls_r[:, PAD:PAD + d["types"]],
                             atol=1e-2, rtol=1e-2))
    assert bool(jnp.allclose(x_rec, rec_r[:, :d["input"]], atol=1e-2, rtol=1e-2))

    print("KERNEL_OK")
</pallas_src>

<mosaic_0001>
module attributes {stable_mosaic.version = 11 : i64} {
  func.func @_fused_forward_kernel(%arg0: i32, %arg1: memref<8x128xf32, #tpu.memory_space<vmem>>, %arg2: memref<3x128x128xbf16, #tpu.memory_space<vmem>>, %arg3: memref<7x128x256xbf16, #tpu.memory_space<vmem>>, %arg4: memref<3x256x256xbf16, #tpu.memory_space<vmem>>, %arg5: memref<16x256xf32, #tpu.memory_space<vmem>>, %arg6: memref<8x128xf32, #tpu.memory_space<vmem>>, %arg7: memref<8x256xf32, #tpu.memory_space<vmem>>, %arg8: memref<8x128xf32, #tpu.memory_space<vmem>>) attributes {dimension_semantics = [#tpu.dimension_semantics<parallel>], iteration_bounds = array<i64: 1>, scalar_prefetch = 0 : i64, scratch_operands = 0 : i64, tpu.core_type = #tpu.core_type<tc>, window_params = [{transform_indices = @transform_0, window_bounds = array<i64: 8, 128>}, {pipeline_mode = #tpu.pipeline_mode<synchronous>, transform_indices = @transform_1, window_bounds = array<i64: 3, 128, 128>}, {pipeline_mode = #tpu.pipeline_mode<synchronous>, transform_indices = @transform_2, window_bounds = array<i64: 7, 128, 256>}, {pipeline_mode = #tpu.pipeline_mode<synchronous>, transform_indices = @transform_3, window_bounds = array<i64: 3, 256, 256>}, {pipeline_mode = #tpu.pipeline_mode<synchronous>, transform_indices = @transform_4, window_bounds = array<i64: 16, 256>}, {transform_indices = @transform_5, window_bounds = array<i64: 8, 128>}, {transform_indices = @transform_6, window_bounds = array<i64: 8, 256>}, {transform_indices = @transform_7, window_bounds = array<i64: 8, 128>}]} {
    %c0 = arith.constant 0 : index
    %c0_0 = arith.constant 0 : index
    %0 = vector.load %arg5[%c0, %c0_0] : memref<16x256xf32, #tpu.memory_space<vmem>>, vector<16x256xf32>
    %c0_1 = arith.constant 0 : index
    %c0_2 = arith.constant 0 : index
    %1 = vector.load %arg1[%c0_1, %c0_2] : memref<8x128xf32, #tpu.memory_space<vmem>>, vector<8x128xf32>
    %c0_3 = arith.constant 0 : index
    %c0_4 = arith.constant 0 : index
    %c0_5 = arith.constant 0 : index
    %2 = vector.load %arg2[%c0_3, %c0_4, %c0_5] : memref<3x128x128xbf16, #tpu.memory_space<vmem>>, vector<1x128x128xbf16>
    %3 = vector.shape_cast %2 : vector<1x128x128xbf16> to vector<128x128xbf16>
    %4 = arith.truncf %1 : vector<8x128xf32> to vector<8x128xbf16>
    %cst = arith.constant dense<0.000000e+00> : vector<8x128xf32>
    %5 = tpu.matmul %4, %3, %cst {dimension_numbers = #tpu.dot_dimension_numbers<[1], [0], [0], [1], [0, 0, 1, 1], [], []>} : vector<8x128xbf16>, vector<128x128xbf16>, vector<8x128xf32> -> vector<8x128xf32>
    %6 = vector.extract_strided_slice %0 {offsets = [0, 0], sizes = [1, 128], strides = [1, 1]} : vector<16x256xf32> to vector<1x128xf32>
    %7 = vector.broadcast %6 : vector<1x128xf32> to vector<8x128xf32>
    %8 = arith.addf %5, %7 : vector<8x128xf32>
    %c0_6 = arith.constant 0 : index
    %c0_7 = arith.constant 0 : index
    %c0_8 = arith.constant 0 : index
    %9 = vector.load %arg3[%c0_6, %c0_7, %c0_8] : memref<7x128x256xbf16, #tpu.memory_space<vmem>>, vector<1x128x256xbf16>
    %10 = vector.shape_cast %9 : vector<1x128x256xbf16> to vector<128x256xbf16>
    %11 = arith.truncf %8 : vector<8x128xf32> to vector<8x128xbf16>
    %cst_9 = arith.constant dense<0.000000e+00> : vector<8x256xf32>
    %12 = tpu.matmul %11, %10, %cst_9 {dimension_numbers = #tpu.dot_dimension_numbers<[1], [0], [0], [1], [0, 0, 1, 1], [], []>} : vector<8x128xbf16>, vector<128x256xbf16>, vector<8x256xf32> -> vector<8x256xf32>
    %13 = vector.extract_strided_slice %12 {offsets = [0, 0], sizes = [8, 128], strides = [1, 1]} : vector<8x256xf32> to vector<8x128xf32>
    %14 = vector.extract_strided_slice %0 {offsets = [1, 0], sizes = [1, 128], strides = [1, 1]} : vector<16x256xf32> to vector<1x128xf32>
    %15 = vector.broadcast %14 : vector<1x128xf32> to vector<8x128xf32>
    %16 = arith.addf %13, %15 : vector<8x128xf32>
    %cst_10 = arith.constant 0.000000e+00 : f32
    %17 = vector.broadcast %cst_10 : f32 to vector<8x128xf32>
    %18 = arith.maximumf %16, %17 : vector<8x128xf32>
    %19 = vector.extract_strided_slice %12 {offsets = [0, 128], sizes = [8, 128], strides = [1, 1]} : vector<8x256xf32> to vector<8x128xf32>
    %20 = arith.addf %18, %19 : vector<8x128xf32>
    %c1 = arith.constant 1 : index
    %c0_11 = arith.constant 0 : index
    %c0_12 = arith.constant 0 : index
    %21 = vector.load %arg3[%c1, %c0_11, %c0_12] : memref<7x128x256xbf16, #tpu.memory_space<vmem>>, vector<1x128x256xbf16>
    %22 = vector.shape_cast %21 : vector<1x128x256xbf16> to vector<128x256xbf16>
    %23 = arith.truncf %20 : vector<8x128xf32> to vector<8x128xbf16>
    %cst_13 = arith.constant dense<0.000000e+00> : vector<8x256xf32>
    %24 = tpu.matmul %23, %22, %cst_13 {dimension_numbers = #tpu.dot_dimension_numbers<[1], [0], [0], [1], [0, 0, 1, 1], [], []>} : vector<8x128xbf16>, vector<128x256xbf16>, vector<8x256xf32> -> vector<8x256xf32>
    %25 = vector.extract_strided_slice %24 {offsets = [0, 0], sizes = [8, 128], strides = [1, 1]} : vector<8x256xf32> to vector<8x128xf32>
    %26 = vector.extract_strided_slice %0 {offsets = [2, 0], sizes = [1, 128], strides = [1, 1]} : vector<16x256xf32> to vector<1x128xf32>
    %27 = vector.broadcast %26 : vector<1x128xf32> to vector<8x128xf32>
    %28 = arith.addf %25, %27 : vector<8x128xf32>
    %cst_14 = arith.constant 0.000000e+00 : f32
    %29 = vector.broadcast %cst_14 : f32 to vector<8x128xf32>
    %30 = arith.maximumf %28, %29 : vector<8x128xf32>
    %31 = vector.extract_strided_slice %24 {offsets = [0, 128], sizes = [8, 128], strides = [1, 1]} : vector<8x256xf32> to vector<8x128xf32>
    %32 = arith.addf %30, %31 : vector<8x128xf32>
    %c2 = arith.constant 2 : index
    %c0_15 = arith.constant 0 : index
    %c0_16 = arith.constant 0 : index
    %33 = vector.load %arg3[%c2, %c0_15, %c0_16] : memref<7x128x256xbf16, #tpu.memory_space<vmem>>, vector<1x128x256xbf16>
    %34 = vector.shape_cast %33 : vector<1x128x256xbf16> to vector<128x256xbf16>
    %35 = arith.truncf %32 : vector<8x128xf32> to vector<8x128xbf16>
    %cst_17 = arith.constant dense<0.000000e+00> : vector<8x256xf32>
    %36 = tpu.matmul %35, %34, %cst_17 {dimension_numbers = #tpu.dot_dimension_numbers<[1], [0], [0], [1], [0, 0, 1, 1], [], []>} : vector<8x128xbf16>, vector<128x256xbf16>, vector<8x256xf32> -> vector<8x256xf32>
    %37 = vector.extract_strided_slice %36 {offsets = [0, 0], sizes = [8, 128], strides = [1, 1]} : vector<8x256xf32> to vector<8x128xf32>
    %38 = vector.extract_strided_slice %0 {offsets = [3, 0], sizes = [1, 128], strides = [1, 1]} : vector<16x256xf32> to vector<1x128xf32>
    %39 = vector.broadcast %38 : vector<1x128xf32> to vector<8x128xf32>
    %40 = arith.addf %37, %39 : vector<8x128xf32>
    %cst_18 = arith.constant 0.000000e+00 : f32
    %41 = vector.broadcast %cst_18 : f32 to vector<8x128xf32>
    %42 = arith.maximumf %40, %41 : vector<8x128xf32>
    %43 = vector.extract_strided_slice %36 {offsets = [0, 128], sizes = [8, 128], strides = [1, 1]} : vector<8x256xf32> to vector<8x128xf32>
    %44 = arith.addf %42, %43 : vector<8x128xf32>
    %c0_19 = arith.constant 0 : index
    %c0_20 = arith.constant 0 : index
    %45 = vector.load %arg6[%c0_19, %c0_20] : memref<8x128xf32, #tpu.memory_space<vmem>>, vector<8x128xf32>
    tpu.vector_store %arg6[%c0_19, %c0_20], %44 {strides = array<i32>} : memref<8x128xf32, #tpu.memory_space<vmem>>, vector<8x128xf32>,
    %c6 = arith.constant 6 : index
    %c0_21 = arith.constant 0 : index
    %c0_22 = arith.constant 0 : index
    %46 = vector.load %arg3[%c6, %c0_21, %c0_22] : memref<7x128x256xbf16, #tpu.memory_space<vmem>>, vector<1x128x256xbf16>
    %47 = vector.shape_cast %46 : vector<1x128x256xbf16> to vector<128x256xbf16>
    %48 = arith.truncf %44 : vector<8x128xf32> to vector<8x128xbf16>
    %cst_23 = arith.constant dense<0.000000e+00> : vector<8x256xf32>
    %49 = tpu.matmul %48, %47, %cst_23 {dimension_numbers = #tpu.dot_dimension_numbers<[1], [0], [0], [1], [0, 0, 1, 1], [], []>} : vector<8x128xbf16>, vector<128x256xbf16>, vector<8x256xf32> -> vector<8x256xf32>
    %50 = vector.extract_strided_slice %0 {offsets = [9, 0], sizes = [1, 256], strides = [1, 1]} : vector<16x256xf32> to vector<1x256xf32>
    %51 = vector.broadcast %50 : vector<1x256xf32> to vector<8x256xf32>
    %52 = arith.addf %49, %51 : vector<8x256xf32>
    %c0_24 = arith.constant 0 : index
    %c0_25 = arith.constant 0 : index
    %c0_26 = arith.constant 0 : index
    %53 = vector.load %arg4[%c0_24, %c0_25, %c0_26] : memref<3x256x256xbf16, #tpu.memory_space<vmem>>, vector<1x256x256xbf16>
    %54 = vector.shape_cast %53 : vector<1x256x256xbf16> to vector<256x256xbf16>
    %55 = arith.truncf %52 : vector<8x256xf32> to vector<8x256xbf16>
    %cst_27 = arith.constant dense<0.000000e+00> : vector<8x256xf32>
    %56 = tpu.matmul %55, %54, %cst_27 {dimension_numbers = #tpu.dot_dimension_numbers<[1], [0], [0], [1], [0, 0, 1, 1], [], []>} : vector<8x256xbf16>, vector<256x256xbf16>, vector<8x256xf32> -> vector<8x256xf32>
    %57 = vector.extract_strided_slice %0 {offsets = [10, 0], sizes = [1, 256], strides = [1, 1]} : vector<16x256xf32> to vector<1x256xf32>
    %58 = vector.broadcast %57 : vector<1x256xf32> to vector<8x256xf32>
    %59 = arith.addf %56, %58 : vector<8x256xf32>
    %cst_28 = arith.constant 0.000000e+00 : f32
    %60 = vector.broadcast %cst_28 : f32 to vector<8x256xf32>
    %61 = arith.maximumf %59, %60 : vector<8x256xf32>
    %62 = arith.addf %61, %52 : vector<8x256xf32>
    %c1_29 = arith.constant 1 : index
    %c0_30 = arith.constant 0 : index
    %c0_31 = arith.constant 0 : index
    %63 = vector.load %arg4[%c1_29, %c0_30, %c0_31] : memref<3x256x256xbf16, #tpu.memory_space<vmem>>, vector<1x256x256xbf16>
    %64 = vector.shape_cast %63 : vector<1x256x256xbf16> to vector<256x256xbf16>
    %65 = arith.truncf %62 : vector<8x256xf32> to vector<8x256xbf16>
    %cst_32 = arith.constant dense<0.000000e+00> : vector<8x256xf32>
    %66 = tpu.matmul %65, %64, %cst_32 {dimension_numbers = #tpu.dot_dimension_numbers<[1], [0], [0], [1], [0, 0, 1, 1], [], []>} : vector<8x256xbf16>, vector<256x256xbf16>, vector<8x256xf32> -> vector<8x256xf32>
    %67 = vector.extract_strided_slice %0 {offsets = [11, 0], sizes = [1, 256], strides = [1, 1]} : vector<16x256xf32> to vector<1x256xf32>
    %68 = vector.broadcast %67 : vector<1x256xf32> to vector<8x256xf32>
    %69 = arith.addf %66, %68 : vector<8x256xf32>
    %cst_33 = arith.constant 0.000000e+00 : f32
    %70 = vector.broadcast %cst_33 : f32 to vector<8x256xf32>
    %71 = arith.maximumf %69, %70 : vector<8x256xf32>
    %72 = arith.addf %71, %62 : vector<8x256xf32>
    %c2_34 = arith.constant 2 : index
    %c0_35 = arith.constant 0 : index
    %c0_36 = arith.constant 0 : index
    %73 = vector.load %arg4[%c2_34, %c0_35, %c0_36] : memref<3x256x256xbf16, #tpu.memory_space<vmem>>, vector<1x256x256xbf16>
    %74 = vector.shape_cast %73 : vector<1x256x256xbf16> to vector<256x256xbf16>
    %75 = arith.truncf %72 : vector<8x256xf32> to vector<8x256xbf16>
    %cst_37 = arith.constant dense<0.000000e+00> : vector<8x256xf32>
    %76 = tpu.matmul %75, %74, %cst_37 {dimension_numbers = #tpu.dot_dimension_numbers<[1], [0], [0], [1], [0, 0, 1, 1], [], []>} : vector<8x256xbf16>, vector<256x256xbf16>, vector<8x256xf32> -> vector<8x256xf32>
    %77 = vector.extract_strided_slice %0 {offsets = [12, 0], sizes = [1, 256], strides = [1, 1]} : vector<16x256xf32> to vector<1x256xf32>
    %78 = vector.broadcast %77 : vector<1x256xf32> to vector<8x256xf32>
    %79 = arith.addf %76, %78 : vector<8x256xf32>
    %c0_38 = arith.constant 0 : index
    %c0_39 = arith.constant 0 : index
    %80 = vector.load %arg7[%c0_38, %c0_39] : memref<8x256xf32, #tpu.memory_space<vmem>>, vector<8x256xf32>
    tpu.vector_store %arg7[%c0_38, %c0_39], %79 {strides = array<i32>} : memref<8x256xf32, #tpu.memory_space<vmem>>, vector<8x256xf32>,
    %c1_40 = arith.constant 1 : index
    %c0_41 = arith.constant 0 : index
    %c0_42 = arith.constant 0 : index
    %81 = vector.load %arg2[%c1_40, %c0_41, %c0_42] : memref<3x128x128xbf16, #tpu.memory_space<vmem>>, vector<1x128x128xbf16>
    %82 = vector.shape_cast %81 : vector<1x128x128xbf16> to vector<128x128xbf16>
    %83 = arith.truncf %44 : vector<8x128xf32> to vector<8x128xbf16>
    %cst_43 = arith.constant dense<0.000000e+00> : vector<8x128xf32>
    %84 = tpu.matmul %83, %82, %cst_43 {dimension_numbers = #tpu.dot_dimension_numbers<[1], [0], [0], [1], [0, 0, 1, 1], [], []>} : vector<8x128xbf16>, vector<128x128xbf16>, vector<8x128xf32> -> vector<8x128xf32>
    %85 = vector.extract_strided_slice %0 {offsets = [4, 0], sizes = [1, 128], strides = [1, 1]} : vector<16x256xf32> to vector<1x128xf32>
    %86 = vector.broadcast %85 : vector<1x128xf32> to vector<8x128xf32>
    %87 = arith.addf %84, %86 : vector<8x128xf32>
    %c3 = arith.constant 3 : index
    %c0_44 = arith.constant 0 : index
    %c0_45 = arith.constant 0 : index
    %88 = vector.load %arg3[%c3, %c0_44, %c0_45] : memref<7x128x256xbf16, #tpu.memory_space<vmem>>, vector<1x128x256xbf16>
    %89 = vector.shape_cast %88 : vector<1x128x256xbf16> to vector<128x256xbf16>
    %90 = arith.truncf %87 : vector<8x128xf32> to vector<8x128xbf16>
    %cst_46 = arith.constant dense<0.000000e+00> : vector<8x256xf32>
    %91 = tpu.matmul %90, %89, %cst_46 {dimension_numbers = #tpu.dot_dimension_numbers<[1], [0], [0], [1], [0, 0, 1, 1], [], []>} : vector<8x128xbf16>, vector<128x256xbf16>, vector<8x256xf32> -> vector<8x256xf32>
    %92 = vector.extract_strided_slice %91 {offsets = [0, 0], sizes = [8, 128], strides = [1, 1]} : vector<8x256xf32> to vector<8x128xf32>
    %93 = vector.extract_strided_slice %0 {offsets = [5, 0], sizes = [1, 128], strides = [1, 1]} : vector<16x256xf32> to vector<1x128xf32>
    %94 = vector.broadcast %93 : vector<1x128xf32> to vector<8x128xf32>
    %95 = arith.addf %92, %94 : vector<8x128xf32>
    %cst_47 = arith.constant 0.000000e+00 : f32
    %96 = vector.broadcast %cst_47 : f32 to vector<8x128xf32>
    %97 = arith.maximumf %95, %96 : vector<8x128xf32>
    %98 = vector.extract_strided_slice %91 {offsets = [0, 128], sizes = [8, 128], strides = [1, 1]} : vector<8x256xf32> to vector<8x128xf32>
    %99 = arith.addf %97, %98 : vector<8x128xf32>
    %c4 = arith.constant 4 : index
    %c0_48 = arith.constant 0 : index
    %c0_49 = arith.constant 0 : index
    %100 = vector.load %arg3[%c4, %c0_48, %c0_49] : memref<7x128x256xbf16, #tpu.memory_space<vmem>>, vector<1x128x256xbf16>
    %101 = vector.shape_cast %100 : vector<1x128x256xbf16> to vector<128x256xbf16>
    %102 = arith.truncf %99 : vector<8x128xf32> to vector<8x128xbf16>
    %cst_50 = arith.constant dense<0.000000e+00> : vector<8x256xf32>
    %103 = tpu.matmul %102, %101, %cst_50 {dimension_numbers = #tpu.dot_dimension_numbers<[1], [0], [0], [1], [0, 0, 1, 1], [], []>} : vector<8x128xbf16>, vector<128x256xbf16>, vector<8x256xf32> -> vector<8x256xf32>
    %104 = vector.extract_strided_slice %103 {offsets = [0, 0], sizes = [8, 128], strides = [1, 1]} : vector<8x256xf32> to vector<8x128xf32>
    %105 = vector.extract_strided_slice %0 {offsets = [6, 0], sizes = [1, 128], strides = [1, 1]} : vector<16x256xf32> to vector<1x128xf32>
    %106 = vector.broadcast %105 : vector<1x128xf32> to vector<8x128xf32>
    %107 = arith.addf %104, %106 : vector<8x128xf32>
    %cst_51 = arith.constant 0.000000e+00 : f32
    %108 = vector.broadcast %cst_51 : f32 to vector<8x128xf32>
    %109 = arith.maximumf %107, %108 : vector<8x128xf32>
    %110 = vector.extract_strided_slice %103 {offsets = [0, 128], sizes = [8, 128], strides = [1, 1]} : vector<8x256xf32> to vector<8x128xf32>
    %111 = arith.addf %109, %110 : vector<8x128xf32>
    %c5 = arith.constant 5 : index
    %c0_52 = arith.constant 0 : index
    %c0_53 = arith.constant 0 : index
    %112 = vector.load %arg3[%c5, %c0_52, %c0_53] : memref<7x128x256xbf16, #tpu.memory_space<vmem>>, vector<1x128x256xbf16>
    %113 = vector.shape_cast %112 : vector<1x128x256xbf16> to vector<128x256xbf16>
    %114 = arith.truncf %111 : vector<8x128xf32> to vector<8x128xbf16>
    %cst_54 = arith.constant dense<0.000000e+00> : vector<8x256xf32>
    %115 = tpu.matmul %114, %113, %cst_54 {dimension_numbers = #tpu.dot_dimension_numbers<[1], [0], [0], [1], [0, 0, 1, 1], [], []>} : vector<8x128xbf16>, vector<128x256xbf16>, vector<8x256xf32> -> vector<8x256xf32>
    %116 = vector.extract_strided_slice %115 {offsets = [0, 0], sizes = [8, 128], strides = [1, 1]} : vector<8x256xf32> to vector<8x128xf32>
    %117 = vector.extract_strided_slice %0 {offsets = [7, 0], sizes = [1, 128], strides = [1, 1]} : vector<16x256xf32> to vector<1x128xf32>
    %118 = vector.broadcast %117 : vector<1x128xf32> to vector<8x128xf32>
    %119 = arith.addf %116, %118 : vector<8x128xf32>
    %cst_55 = arith.constant 0.000000e+00 : f32
    %120 = vector.broadcast %cst_55 : f32 to vector<8x128xf32>
    %121 = arith.maximumf %119, %120 : vector<8x128xf32>
    %122 = vector.extract_strided_slice %115 {offsets = [0, 128], sizes = [8, 128], strides = [1, 1]} : vector<8x256xf32> to vector<8x128xf32>
    %123 = arith.addf %121, %122 : vector<8x128xf32>
    %c2_56 = arith.constant 2 : index
    %c0_57 = arith.constant 0 : index
    %c0_58 = arith.constant 0 : index
    %124 = vector.load %arg2[%c2_56, %c0_57, %c0_58] : memref<3x128x128xbf16, #tpu.memory_space<vmem>>, vector<1x128x128xbf16>
    %125 = vector.shape_cast %124 : vector<1x128x128xbf16> to vector<128x128xbf16>
    %126 = arith.truncf %123 : vector<8x128xf32> to vector<8x128xbf16>
    %cst_59 = arith.constant dense<0.000000e+00> : vector<8x128xf32>
    %127 = tpu.matmul %126, %125, %cst_59 {dimension_numbers = #tpu.dot_dimension_numbers<[1], [0], [0], [1], [0, 0, 1, 1], [], []>} : vector<8x128xbf16>, vector<128x128xbf16>, vector<8x128xf32> -> vector<8x128xf32>
    %128 = vector.extract_strided_slice %0 {offsets = [8, 0], sizes = [1, 128], strides = [1, 1]} : vector<16x256xf32> to vector<1x128xf32>
    %129 = vector.broadcast %128 : vector<1x128xf32> to vector<8x128xf32>
    %130 = arith.addf %127, %129 : vector<8x128xf32>
    %c0_60 = arith.constant 0 : index
    %c0_61 = arith.constant 0 : index
    %131 = vector.load %arg8[%c0_60, %c0_61] : memref<8x128xf32, #tpu.memory_space<vmem>>, vector<8x128xf32>
    tpu.vector_store %arg8[%c0_60, %c0_61], %130 {strides = array<i32>} : memref<8x128xf32, #tpu.memory_space<vmem>>, vector<8x128xf32>,
    return
  }
  func.func @transform_0(%arg0: i32) -> (i32, i32) {
    %c0_i32 = arith.constant 0 : i32
    %c0_i32_0 = arith.constant 0 : i32
    return %arg0, %c0_i32 : i32, i32
  }
  func.func @transform_1(%arg0: i32) -> (i32, i32, i32) {
    %c0_i32 = arith.constant 0 : i32
    %c0_i32_0 = arith.constant 0 : i32
    %c0_i32_1 = arith.constant 0 : i32
    %c0_i32_2 = arith.constant 0 : i32
    return %c0_i32, %c0_i32_0, %c0_i32_1 : i32, i32, i32
  }
  func.func @transform_2(%arg0: i32) -> (i32, i32, i32) {
    %c0_i32 = arith.constant 0 : i32
    %c0_i32_0 = arith.constant 0 : i32
    %c0_i32_1 = arith.constant 0 : i32
    %c0_i32_2 = arith.constant 0 : i32
    return %c0_i32, %c0_i32_0, %c0_i32_1 : i32, i32, i32
  }
  func.func @transform_3(%arg0: i32) -> (i32, i32, i32) {
    %c0_i32 = arith.constant 0 : i32
    %c0_i32_0 = arith.constant 0 : i32
    %c0_i32_1 = arith.constant 0 : i32
    %c0_i32_2 = arith.constant 0 : i32
    return %c0_i32, %c0_i32_0, %c0_i32_1 : i32, i32, i32
  }
  func.func @transform_4(%arg0: i32) -> (i32, i32) {
    %c0_i32 = arith.constant 0 : i32
    %c0_i32_0 = arith.constant 0 : i32
    %c0_i32_1 = arith.constant 0 : i32
    return %c0_i32, %c0_i32_0 : i32, i32
  }
  func.func @transform_5(%arg0: i32) -> (i32, i32) {
    %c0_i32 = arith.constant 0 : i32
    %c0_i32_0 = arith.constant 0 : i32
    return %arg0, %c0_i32 : i32, i32
  }
  func.func @transform_6(%arg0: i32) -> (i32, i32) {
    %c0_i32 = arith.constant 0 : i32
    %c0_i32_0 = arith.constant 0 : i32
    return %arg0, %c0_i32 : i32, i32
  }
  func.func @transform_7(%arg0: i32) -> (i32, i32) {
    %c0_i32 = arith.constant 0 : i32
    %c0_i32_0 = arith.constant 0 : i32
    return %arg0, %c0_i32 : i32, i32
  }
}

</mosaic_0001>

<llo_original>
// kernel: tpu_custom_call.1
$region0: #{tpu_custom_call.1}
  #allocation0 [shape = 'u32[]', space=smem, size = 0x4, offset = 0x4, fixed_abs, tag = 'smem constant byte address 0x4 - core index']
  #allocation1 [shape = 'u32[144,128]{1,0:T(1,128)}', space=vmem, size = 0x12000, scoped, tag = 'internal scratch']
  %s0 = inlined_call_operand.hbm [shape: f32[8,128], index: 0, kind: input, shape index: {}]
  %s1 = inlined_call_operand.hbm [shape: bf16[3,128,128], index: 1, kind: input, shape index: {}]
  %s2 = inlined_call_operand.hbm [shape: bf16[7,128,256], index: 2, kind: input, shape index: {}]
  %s3 = inlined_call_operand.hbm [shape: bf16[3,256,256], index: 3, kind: input, shape index: {}]
  %s4 = inlined_call_operand.hbm [shape: f32[16,256], index: 4, kind: input, shape index: {}]
  %s5 = inlined_call_operand.hbm [shape: f32[8,128], index: 5, kind: output, shape index: {0}]
  %s6 = inlined_call_operand.hbm [shape: f32[8,256], index: 6, kind: output, shape index: {1}]
  %s7 = inlined_call_operand.hbm [shape: f32[8,128], index: 7, kind: output, shape index: {2}]
  %8 = xla_tuple %s5, %s6, %s7
  %s9 = sld [smem:[#allocation0]]
  $region66: #{tpu_custom_call.1} parent=0
    _
  %s11 = ssub.s32 1, %s9
  %s12 = scalar_select 0, %s11, %s9
  $region1: #{tpu_custom_call.1} parent=0
    #allocation2 [shape = 'u8[4096]{0}', space=vmem, size = 0x1000, scoped, tag = 'input window, operand 0, single buffered']
    #allocation3 [shape = 's32[1]{0}', space=sflag, size = 0x4, scoped, tag = 'scoped memory for tpu_custom_call.1']
    #allocation4 [shape = 's32[1]{0}', space=sflag, size = 0x4, scoped, tag = 'scoped memory for tpu_custom_call.1']
    #allocation5 [shape = 'u8[98304]{0}', space=vmem, size = 0x18000, scoped, tag = 'input window, operand 1, single buffered']
    #allocation6 [shape = 's32[1]{0}', space=sflag, size = 0x4, scoped, tag = 'scoped memory for tpu_custom_call.1']
    #allocation7 [shape = 'u8[458752]{0}', space=vmem, size = 0x70000, scoped, tag = 'input window, operand 2, single buffered']
    #allocation8 [shape = 'u8[393216]{0}', space=vmem, size = 0x60000, scoped, tag = 'input window, operand 3, single buffered']
    #allocation9 [shape = 's32[1]{0}', space=sflag, size = 0x4, scoped, tag = 'scoped memory for tpu_custom_call.1']
    #allocation10 [shape = 'u8[16384]{0}', space=vmem, size = 0x4000, scoped, tag = 'input window, operand 4, single buffered']
    #allocation11 [shape = 'u8[4096]{0}', space=vmem, size = 0x1000, scoped, tag = 'output window, operand 0, single buffered']
    #allocation12 [shape = 'u8[8192]{0}', space=vmem, size = 0x2000, scoped, tag = 'output window, operand 1, single buffered']
    #allocation13 [shape = 's32[1]{0}', space=sflag, size = 0x4, scoped, tag = 'scoped memory for tpu_custom_call.1']
    #allocation14 [shape = 'u8[4096]{0}', space=vmem, size = 0x1000, scoped, tag = 'output window, operand 2, single buffered']
    %13 = vsyncpa [#allocation3], 0
    %14 = vsyncpa [#allocation6], 0
    %15 = vsyncpa [#allocation9], 0
    %16 = vsyncpa [#allocation4], 0
    %17 = vsyncpa [#allocation13], 0
    // Predicated region
    $region2: #{tpu_custom_call.1} parent=1 // pred_check
      _
    $region3: #{tpu_custom_call.1} parent=1 // pred_check_branch
      %19 = sbr.rel (0) target = $region5
    $region4: #{tpu_custom_call.1} parent=1 // pred_region
      %s21 = ssub.s32 128, 128
      %22 = vsyncadd [#allocation3], %s21
      %s24 = sshll.u32 [#allocation2], 4
      %s25 = int_to_ptr.vmem [resolvable:$true] %s24
      %27 = dma.hbm_to_vmem [thread:$0]  %s0, 128, %s25, [#allocation3]
    $region5: #{tpu_custom_call.1} parent=1 // pred_fallthru
      _
    // Predicated region
    $region6: #{tpu_custom_call.1} parent=1 // pred_check
      _
    $region7: #{tpu_custom_call.1} parent=1 // pred_check_branch
      %29 = sbr.rel (0) target = $region9
    $region8: #{tpu_custom_call.1} parent=1 // pred_region
      %s31 = ssub.s32 3072, 3072
      %32 = vsyncadd [#allocation6], %s31
      %s33 = sshll.u32 [#allocation5], 4
      %s34 = int_to_ptr.vmem [resolvable:$true] %s33
      %39 = dma.hbm_to_vmem [thread:$0]  %s1, 3072, %s34, [#allocation6], 64, 64, 4
    $region9: #{tpu_custom_call.1} parent=1 // pred_fallthru
      _
    // Predicated region
    $region10: #{tpu_custom_call.1} parent=1 // pred_check
      _
    $region11: #{tpu_custom_call.1} parent=1 // pred_check_branch
      %41 = sbr.rel (0) target = $region13
    $region12: #{tpu_custom_call.1} parent=1 // pred_region
      %s43 = ssub.s32 14336, 14336
      %44 = vsyncadd [#allocation6], %s43
      %s45 = sshll.u32 [#allocation7], 4
      %s46 = int_to_ptr.vmem [resolvable:$true] %s45
      %51 = dma.hbm_to_vmem [thread:$0]  %s2, 14336, %s46, [#allocation6], 128, 128, 8
    $region13: #{tpu_custom_call.1} parent=1 // pred_fallthru
      _
    // Predicated region
    $region14: #{tpu_custom_call.1} parent=1 // pred_check
      _
    $region15: #{tpu_custom_call.1} parent=1 // pred_check_branch
      %53 = sbr.rel (0) target = $region17
    $region16: #{tpu_custom_call.1} parent=1 // pred_region
      %s55 = ssub.s32 12288, 12288
      %56 = vsyncadd [#allocation9], %s55
      %s57 = sshll.u32 [#allocation8], 4
      %s58 = int_to_ptr.vmem [resolvable:$true] %s57
      %63 = dma.hbm_to_vmem [thread:$0]  %s3, 12288, %s58, [#allocation9], 128, 128, 8
    $region17: #{tpu_custom_call.1} parent=1 // pred_fallthru
      _
    // Predicated region
    $region18: #{tpu_custom_call.1} parent=1 // pred_check
      _
    $region19: #{tpu_custom_call.1} parent=1 // pred_check_branch
      %65 = sbr.rel (0) target = $region21
    $region20: #{tpu_custom_call.1} parent=1 // pred_region
      %s67 = ssub.s32 512, 512
      %68 = vsyncadd [#allocation9], %s67
      %s69 = sshll.u32 [#allocation10], 4
      %s70 = int_to_ptr.vmem [resolvable:$true] %s69
      %75 = dma.hbm_to_vmem [thread:$0]  %s4, 512, %s70, [#allocation9], 256, 256, 16
    $region21: #{tpu_custom_call.1} parent=1 // pred_fallthru
      _
    // Predicated region
    $region22: #{tpu_custom_call.1} parent=1 // pred_check
      _
    $region23: #{tpu_custom_call.1} parent=1 // pred_check_branch
      %77 = sbr.rel (0) target = $region25
    $region24: #{tpu_custom_call.1} parent=1 // pred_region
      %78 = dma.done [#allocation3], 128
    $region25: #{tpu_custom_call.1} parent=1 // pred_fallthru
      _
    // Predicated region
    $region26: #{tpu_custom_call.1} parent=1 // pred_check
      _
    $region27: #{tpu_custom_call.1} parent=1 // pred_check_branch
      %80 = sbr.rel (0) target = $region29
    $region28: #{tpu_custom_call.1} parent=1 // pred_region
      %81 = dma.done [#allocation6], 3072
    $region29: #{tpu_custom_call.1} parent=1 // pred_fallthru
      _
    // Predicated region
    $region30: #{tpu_custom_call.1} parent=1 // pred_check
      _
    $region31: #{tpu_custom_call.1} parent=1 // pred_check_branch
      %83 = sbr.rel (0) target = $region33
    $region32: #{tpu_custom_call.1} parent=1 // pred_region
      %84 = dma.done [#allocation6], 14336
    $region33: #{tpu_custom_call.1} parent=1 // pred_fallthru
      _
    // Predicated region
    $region34: #{tpu_custom_call.1} parent=1 // pred_check
      _
    $region35: #{tpu_custom_call.1} parent=1 // pred_check_branch
      %86 = sbr.rel (0) target = $region37
    $region36: #{tpu_custom_call.1} parent=1 // pred_region
      %87 = dma.done [#allocation9], 12288
    $region37: #{tpu_custom_call.1} parent=1 // pred_fallthru
      _
    // Predicated region
    $region38: #{tpu_custom_call.1} parent=1 // pred_check
      _
    $region39: #{tpu_custom_call.1} parent=1 // pred_check_branch
      %89 = sbr.rel (0) target = $region41
    $region40: #{tpu_custom_call.1} parent=1 // pred_region
      %90 = dma.done [#allocation9], 512
    $region41: #{tpu_custom_call.1} parent=1 // pred_fallthru
      _
    %v92 = vld [vmem:[#allocation10] sm:$0xff]
    %v93 = vld [vmem:[#allocation10 + $0x10] sm:$0xff]
    %v94 = vld [vmem:[#allocation10 + $0x18] sm:$0xff]
    %v95 = vld [vmem:[#allocation2] sm:$0xff]
    %v96 = vld [vmem:[#allocation5] sm:$0xf]
    %v97 = vld [vmem:[#allocation5 + $0x4] sm:$0xf]
    %v98 = vld [vmem:[#allocation5 + $0x8] sm:$0xf]
    %v99 = vld [vmem:[#allocation5 + $0xc] sm:$0xf]
    %v100 = vld [vmem:[#allocation5 + $0x10] sm:$0xf]
    %v101 = vld [vmem:[#allocation5 + $0x14] sm:$0xf]
    %v102 = vld [vmem:[#allocation5 + $0x18] sm:$0xf]
    %v103 = vld [vmem:[#allocation5 + $0x1c] sm:$0xf]
    %v104 = vld [vmem:[#allocation5 + $0x20] sm:$0xf]
    %v105 = vld [vmem:[#allocation5 + $0x24] sm:$0xf]
    %v106 = vld [vmem:[#allocation5 + $0x28] sm:$0xf]
    %v107 = vld [vmem:[#allocation5 + $0x2c] sm:$0xf]
    %v108 = vld [vmem:[#allocation5 + $0x30] sm:$0xf]
    %v109 = vld [vmem:[#allocation5 + $0x34] sm:$0xf]
    %v110 = vld [vmem:[#allocation5 + $0x38] sm:$0xf]
    %v111 = vld [vmem:[#allocation5 + $0x3c] sm:$0xf]
    %v112 = vpack.c.bf16 %v95, %v95
    %v113 = vlaneseq
    %v114 = vshrl.u32 %v113, 7
    %v115 = vsub.s32 0, %v114
    %v116 = vrot.slane %v92, %v115
    %v133 = vunpack.c.l.b16 %v96
    %v134 = vunpack.c.l.b16 %v97
    %v135 = vunpack.c.l.b16 %v98
    %v136 = vunpack.c.l.b16 %v99
    %v137 = vunpack.c.l.b16 %v100
    %v138 = vunpack.c.l.b16 %v101
    %v139 = vunpack.c.l.b16 %v102
    %v140 = vunpack.c.l.b16 %v103
    %v141 = vunpack.c.l.b16 %v104
    %v142 = vunpack.c.l.b16 %v105
    %v143 = vunpack.c.l.b16 %v106
    %v144 = vunpack.c.l.b16 %v107
    %v145 = vunpack.c.l.b16 %v108
    %v146 = vunpack.c.l.b16 %v109
    %v147 = vunpack.c.l.b16 %v110
    %v148 = vunpack.c.l.b16 %v111
    %v149 = vpack.c.b16 %v134, %v133
    %v150 = vpack.c.b16 %v136, %v135
    %v151 = vpack.c.b16 %v138, %v137
    %v152 = vpack.c.b16 %v140, %v139
    %v153 = vpack.c.b16 %v142, %v141
    %v154 = vpack.c.b16 %v144, %v143
    %v155 = vpack.c.b16 %v146, %v145
    %v156 = vpack.c.b16 %v148, %v147
    %165 = vmatprep.subr.bf16.mxu0 0
    %166 = vmatpush1.bf16.msra.mxu0 %v149
    %167 = vmatprep.subr.bf16.mxu0 0
    %168 = vmatpush1.bf16.msra.mxu0 %v150
    %169 = vmatprep.subr.bf16.mxu0 0
    %170 = vmatpush1.bf16.msra.mxu0 %v151
    %171 = vmatprep.subr.bf16.mxu0 0
    %172 = vmatpush1.bf16.msra.mxu0 %v152
    %173 = vmatprep.subr.bf16.mxu0 0
    %174 = vmatpush1.bf16.msra.mxu0 %v153
    %175 = vmatprep.subr.bf16.mxu0 0
    %176 = vmatpush1.bf16.msra.mxu0 %v154
    %177 = vmatprep.subr.bf16.mxu0 0
    %178 = vmatpush1.bf16.msra.mxu0 %v155
    %179 = vmatprep.subr.bf16.mxu0 0
    %180 = vmatpush1.bf16.msra.mxu0 %v156
    %181 = vmatprep.subr.bf16.mxu0 0
    %182 = vmatpush1.bf16.msra.mxu0 0
    %183 = vmatprep.subr.bf16.mxu0 0
    %184 = vmatpush1.bf16.msra.mxu0 0
    %185 = vmatprep.subr.bf16.mxu0 0
    %186 = vmatpush1.bf16.msra.mxu0 0
    %187 = vmatprep.subr.bf16.mxu0 0
    %188 = vmatpush1.bf16.msra.mxu0 0
    %189 = vmatprep.subr.bf16.mxu0 0
    %190 = vmatpush1.bf16.msra.mxu0 0
    %191 = vmatprep.subr.bf16.mxu0 0
    %192 = vmatpush1.bf16.msra.mxu0 0
    %193 = vmatprep.subr.bf16.mxu0 0
    %194 = vmatpush1.bf16.msra.mxu0 0
    %195 = vmatprep.subr.bf16.mxu0 0
    %196 = vmatpush1.bf16.msra.mxu0 0
    %197 = vmatprep.mubr.bf16.mxu0 0
    %198 = vmatmul.mubr.bf16.gmra.mrb[0].mxu0 %v112
    %v199 = vpop.f32.mrb[0].mxu0
    %v200 = vadd.f32 %v116, %v199
    %v201 = vpop.f32.mrb[0].mxu0
    %v202 = vpop.f32.mrb[0].mxu0
    %v203 = vpop.f32.mrb[0].mxu0
    %204 = vdwg.mxu0
    %v205 = vld [vmem:[#allocation7] sm:$0xff]
    %v206 = vld [vmem:[#allocation7 + $0x8] sm:$0xff]
    %v207 = vld [vmem:[#allocation7 + $0x10] sm:$0xff]
    %v208 = vld [vmem:[#allocation7 + $0x18] sm:$0xff]
    %v209 = vld [vmem:[#allocation7 + $0x20] sm:$0xff]
    %v210 = vld [vmem:[#allocation7 + $0x28] sm:$0xff]
    %v211 = vld [vmem:[#allocation7 + $0x30] sm:$0xff]
    %v212 = vld [vmem:[#allocation7 + $0x38] sm:$0xff]
    %v213 = vld [vmem:[#allocation7 + $0x40] sm:$0xff]
    %v214 = vld [vmem:[#allocation7 + $0x48] sm:$0xff]
    %v215 = vld [vmem:[#allocation7 + $0x50] sm:$0xff]
    %v216 = vld [vmem:[#allocation7 + $0x58] sm:$0xff]
    %v217 = vld [vmem:[#allocation7 + $0x60] sm:$0xff]
    %v218 = vld [vmem:[#allocation7 + $0x68] sm:$0xff]
    %v219 = vld [vmem:[#allocation7 + $0x70] sm:$0xff]
    %v220 = vld [vmem:[#allocation7 + $0x78] sm:$0xff]
    %v221 = vpack.c.bf16 %v200, %v200
    %v238 = vunpack.c.l.b16 %v205
    %v239 = vunpack.c.h.b16 %v205
    %v240 = vunpack.c.l.b16 %v206
    %v241 = vunpack.c.h.b16 %v206
    %v242 = vunpack.c.l.b16 %v207
    %v243 = vunpack.c.h.b16 %v207
    %v244 = vunpack.c.l.b16 %v208
    %v245 = vunpack.c.h.b16 %v208
    %v246 = vunpack.c.l.b16 %v209
    %v247 = vunpack.c.h.b16 %v209
    %v248 = vunpack.c.l.b16 %v210
    %v249 = vunpack.c.h.b16 %v210
    %v250 = vunpack.c.l.b16 %v211
    %v251 = vunpack.c.h.b16 %v211
    %v252 = vunpack.c.l.b16 %v212
    %v253 = vunpack.c.h.b16 %v212
    %v254 = vunpack.c.l.b16 %v213
    %v255 = vunpack.c.h.b16 %v213
    %v256 = vunpack.c.l.b16 %v214
    %v257 = vunpack.c.h.b16 %v214
    %v258 = vunpack.c.l.b16 %v215
    %v259 = vunpack.c.h.b16 %v215
    %v260 = vunpack.c.l.b16 %v216
    %v261 = vunpack.c.h.b16 %v216
    %v262 = vunpack.c.l.b16 %v217
    %v263 = vunpack.c.h.b16 %v217
    %v264 = vunpack.c.l.b16 %v218
    %v265 = vunpack.c.h.b16 %v218
    %v266 = vunpack.c.l.b16 %v219
    %v267 = vunpack.c.h.b16 %v219
    %v268 = vunpack.c.l.b16 %v220
    %v269 = vunpack.c.h.b16 %v220
    %v270 = vpack.c.b16 %v240, %v238
    %v271 = vpack.c.b16 %v241, %v239
    %v272 = vpack.c.b16 %v244, %v242
    %v273 = vpack.c.b16 %v245, %v243
    %v274 = vpack.c.b16 %v248, %v246
    %v275 = vpack.c.b16 %v249, %v247
    %v276 = vpack.c.b16 %v252, %v250
    %v277 = vpack.c.b16 %v253, %v251
    %v278 = vpack.c.b16 %v256, %v254
    %v279 = vpack.c.b16 %v257, %v255
    %v280 = vpack.c.b16 %v260, %v258
    %v281 = vpack.c.b16 %v261, %v259
    %v282 = vpack.c.b16 %v264, %v262
    %v283 = vpack.c.b16 %v265, %v263
    %v284 = vpack.c.b16 %v268, %v266
    %v285 = vpack.c.b16 %v269, %v267
    %302 = vmatprep.subr.bf16.mxu0 %v271
    %303 = vmatpush1.bf16.msra.mxu0 %v270
    %304 = vmatprep.subr.bf16.mxu0 %v273
    %305 = vmatpush1.bf16.msra.mxu0 %v272
    %306 = vmatprep.subr.bf16.mxu0 %v275
    %307 = vmatpush1.bf16.msra.mxu0 %v274
    %308 = vmatprep.subr.bf16.mxu0 %v277
    %309 = vmatpush1.bf16.msra.mxu0 %v276
    %310 = vmatprep.subr.bf16.mxu0 %v279
    %311 = vmatpush1.bf16.msra.mxu0 %v278
    %312 = vmatprep.subr.bf16.mxu0 %v281
    %313 = vmatpush1.bf16.msra.mxu0 %v280
    %314 = vmatprep.subr.bf16.mxu0 %v283
    %315 = vmatpush1.bf16.msra.mxu0 %v282
    %316 = vmatprep.subr.bf16.mxu0 %v285
    %317 = vmatpush1.bf16.msra.mxu0 %v284
    %318 = vmatprep.subr.bf16.mxu0 0
    %319 = vmatpush1.bf16.msra.mxu0 0
    %320 = vmatprep.subr.bf16.mxu0 0
    %321 = vmatpush1.bf16.msra.mxu0 0
    %322 = vmatprep.subr.bf16.mxu0 0
    %323 = vmatpush1.bf16.msra.mxu0 0
    %324 = vmatprep.subr.bf16.mxu0 0
    %325 = vmatpush1.bf16.msra.mxu0 0
    %326 = vmatprep.subr.bf16.mxu0 0
    %327 = vmatpush1.bf16.msra.mxu0 0
    %328 = vmatprep.subr.bf16.mxu0 0
    %329 = vmatpush1.bf16.msra.mxu0 0
    %330 = vmatprep.subr.bf16.mxu0 0
    %331 = vmatpush1.bf16.msra.mxu0 0
    %332 = vmatprep.subr.bf16.mxu0 0
    %333 = vmatpush1.bf16.msra.mxu0 0
    %334 = vmatprep.mubr.bf16.mxu0 0
    %335 = vmatmul.mubr.bf16.gmra.mrb[0].mxu0 %v221
    %v336 = vpop.f32.mrb[0].mxu0
    %v337 = vadd.f32 0.0, %v336
    %v338 = vpop.f32.mrb[0].mxu0
    %v339 = vadd.f32 0.0, %v338
    %v340 = vpop.f32.mrb[0].mxu0
    %v341 = vpop.f32.mrb[0].mxu0
    %342 = vdwg.mxu0
    %v343 = vlaneseq
    %v344 = vshrl.u32 %v343, 7
    %v345 = vsub.s32 1, %v344
    %v346 = vrot.slane %v92, %v345
    %v347 = vadd.f32 %v337, %v346
    %v348 = vmax.f32 %v347, 0.0
    %v349 = vadd.f32 %v348, %v339
    %s350 = scalar_lea.vmem [#allocation7], 128
    %v351 = vld [vmem:[%s350] sm:$0xff]
    %v352 = vld [vmem:[%s350 + $0x8] sm:$0xff]
    %v353 = vld [vmem:[%s350 + $0x10] sm:$0xff]
    %v354 = vld [vmem:[%s350 + $0x18] sm:$0xff]
    %v355 = vld [vmem:[%s350 + $0x20] sm:$0xff]
    %v356 = vld [vmem:[%s350 + $0x28] sm:$0xff]
    %v357 = vld [vmem:[%s350 + $0x30] sm:$0xff]
    %v358 = vld [vmem:[%s350 + $0x38] sm:$0xff]
    %v359 = vld [vmem:[%s350 + $0x40] sm:$0xff]
    %v360 = vld [vmem:[%s350 + $0x48] sm:$0xff]
    %v361 = vld [vmem:[%s350 + $0x50] sm:$0xff]
    %v362 = vld [vmem:[%s350 + $0x58] sm:$0xff]
    %v363 = vld [vmem:[%s350 + $0x60] sm:$0xff]
    %v364 = vld [vmem:[%s350 + $0x68] sm:$0xff]
    %v365 = vld [vmem:[%s350 + $0x70] sm:$0xff]
    %v366 = vld [vmem:[%s350 + $0x78] sm:$0xff]
    %v367 = vpack.c.bf16 %v349, %v349
    %v384 = vunpack.c.l.b16 %v351
    %v385 = vunpack.c.h.b16 %v351
    %v386 = vunpack.c.l.b16 %v352
    %v387 = vunpack.c.h.b16 %v352
    %v388 = vunpack.c.l.b16 %v353
    %v389 = vunpack.c.h.b16 %v353
    %v390 = vunpack.c.l.b16 %v354
    %v391 = vunpack.c.h.b16 %v354
    %v392 = vunpack.c.l.b16 %v355
    %v393 = vunpack.c.h.b16 %v355
    %v394 = vunpack.c.l.b16 %v356
    %v395 = vunpack.c.h.b16 %v356
    %v396 = vunpack.c.l.b16 %v357
    %v397 = vunpack.c.h.b16 %v357
    %v398 = vunpack.c.l.b16 %v358
    %v399 = vunpack.c.h.b16 %v358
    %v400 = vunpack.c.l.b16 %v359
    %v401 = vunpack.c.h.b16 %v359
    %v402 = vunpack.c.l.b16 %v360
    %v403 = vunpack.c.h.b16 %v360
    %v404 = vunpack.c.l.b16 %v361
    %v405 = vunpack.c.h.b16 %v361
    %v406 = vunpack.c.l.b16 %v362
    %v407 = vunpack.c.h.b16 %v362
    %v408 = vunpack.c.l.b16 %v363
    %v409 = vunpack.c.h.b16 %v363
    %v410 = vunpack.c.l.b16 %v364
    %v411 = vunpack.c.h.b16 %v364
    %v412 = vunpack.c.l.b16 %v365
    %v413 = vunpack.c.h.b16 %v365
    %v414 = vunpack.c.l.b16 %v366
    %v415 = vunpack.c.h.b16 %v366
    %v416 = vpack.c.b16 %v386, %v384
    %v417 = vpack.c.b16 %v387, %v385
    %v418 = vpack.c.b16 %v390, %v388
    %v419 = vpack.c.b16 %v391, %v389
    %v420 = vpack.c.b16 %v394, %v392
    %v421 = vpack.c.b16 %v395, %v393
    %v422 = vpack.c.b16 %v398, %v396
    %v423 = vpack.c.b16 %v399, %v397
    %v424 = vpack.c.b16 %v402, %v400
    %v425 = vpack.c.b16 %v403, %v401
    %v426 = vpack.c.b16 %v406, %v404
    %v427 = vpack.c.b16 %v407, %v405
    %v428 = vpack.c.b16 %v410, %v408
    %v429 = vpack.c.b16 %v411, %v409
    %v430 = vpack.c.b16 %v414, %v412
    %v431 = vpack.c.b16 %v415, %v413
    %448 = vmatprep.subr.bf16.mxu0 %v417
    %449 = vmatpush1.bf16.msra.mxu0 %v416
    %450 = vmatprep.subr.bf16.mxu0 %v419
    %451 = vmatpush1.bf16.msra.mxu0 %v418
    %452 = vmatprep.subr.bf16.mxu0 %v421
    %453 = vmatpush1.bf16.msra.mxu0 %v420
    %454 = vmatprep.subr.bf16.mxu0 %v423
    %455 = vmatpush1.bf16.msra.mxu0 %v422
    %456 = vmatprep.subr.bf16.mxu0 %v425
    %457 = vmatpush1.bf16.msra.mxu0 %v424
    %458 = vmatprep.subr.bf16.mxu0 %v427
    %459 = vmatpush1.bf16.msra.mxu0 %v426
    %460 = vmatprep.subr.bf16.mxu0 %v429
    %461 = vmatpush1.bf16.msra.mxu0 %v428
    %462 = vmatprep.subr.bf16.mxu0 %v431
    %463 = vmatpush1.bf16.msra.mxu0 %v430
    %464 = vmatprep.subr.bf16.mxu0 0
    %465 = vmatpush1.bf16.msra.mxu0 0
    %466 = vmatprep.subr.bf16.mxu0 0
    %467 = vmatpush1.bf16.msra.mxu0 0
    %468 = vmatprep.subr.bf16.mxu0 0
    %469 = vmatpush1.bf16.msra.mxu0 0
    %470 = vmatprep.subr.bf16.mxu0 0
    %471 = vmatpush1.bf16.msra.mxu0 0
    %472 = vmatprep.subr.bf16.mxu0 0
    %473 = vmatpush1.bf16.msra.mxu0 0
    %474 = vmatprep.subr.bf16.mxu0 0
    %475 = vmatpush1.bf16.msra.mxu0 0
    %476 = vmatprep.subr.bf16.mxu0 0
    %477 = vmatpush1.bf16.msra.mxu0 0
    %478 = vmatprep.subr.bf16.mxu0 0
    %479 = vmatpush1.bf16.msra.mxu0 0
    %480 = vmatprep.mubr.bf16.mxu0 0
    %481 = vmatmul.mubr.bf16.gmra.mrb[0].mxu0 %v367
    %v482 = vpop.f32.mrb[0].mxu0
    %v483 = vadd.f32 0.0, %v482
    %v484 = vpop.f32.mrb[0].mxu0
    %v485 = vadd.f32 0.0, %v484
    %v486 = vpop.f32.mrb[0].mxu0
    %v487 = vpop.f32.mrb[0].mxu0
    %488 = vdwg.mxu0
    %v489 = vlaneseq
    %v490 = vshrl.u32 %v489, 7
    %v491 = vsub.s32 2, %v490
    %v492 = vrot.slane %v92, %v491
    %v493 = vadd.f32 %v483, %v492
    %v494 = vmax.f32 %v493, 0.0
    %v495 = vadd.f32 %v494, %v485
    %s496 = scalar_lea.vmem [#allocation7], 256
    %v497 = vld [vmem:[%s496] sm:$0xff]
    %v498 = vld [vmem:[%s496 + $0x8] sm:$0xff]
    %v499 = vld [vmem:[%s496 + $0x10] sm:$0xff]
    %v500 = vld [vmem:[%s496 + $0x18] sm:$0xff]
    %v501 = vld [vmem:[%s496 + $0x20] sm:$0xff]
    %v502 = vld [vmem:[%s496 + $0x28] sm:$0xff]
    %v503 = vld [vmem:[%s496 + $0x30] sm:$0xff]
    %v504 = vld [vmem:[%s496 + $0x38] sm:$0xff]
    %v505 = vld [vmem:[%s496 + $0x40] sm:$0xff]
    %v506 = vld [vmem:[%s496 + $0x48] sm:$0xff]
    %v507 = vld [vmem:[%s496 + $0x50] sm:$0xff]
    %v508 = vld [vmem:[%s496 + $0x58] sm:$0xff]
    %v509 = vld [vmem:[%s496 + $0x60] sm:$0xff]
    %v510 = vld [vmem:[%s496 + $0x68] sm:$0xff]
    %v511 = vld [vmem:[%s496 + $0x70] sm:$0xff]
    %v512 = vld [vmem:[%s496 + $0x78] sm:$0xff]
    %v513 = vpack.c.bf16 %v495, %v495
    %v530 = vunpack.c.l.b16 %v497
    %v531 = vunpack.c.h.b16 %v497
    %v532 = vunpack.c.l.b16 %v498
    %v533 = vunpack.c.h.b16 %v498
    %v534 = vunpack.c.l.b16 %v499
    %v535 = vunpack.c.h.b16 %v499
    %v536 = vunpack.c.l.b16 %v500
    %v537 = vunpack.c.h.b16 %v500
    %v538 = vunpack.c.l.b16 %v501
    %v539 = vunpack.c.h.b16 %v501
    %v540 = vunpack.c.l.b16 %v502
    %v541 = vunpack.c.h.b16 %v502
    %v542 = vunpack.c.l.b16 %v503
    %v543 = vunpack.c.h.b16 %v503
    %v544 = vunpack.c.l.b16 %v504
    %v545 = vunpack.c.h.b16 %v504
    %v546 = vunpack.c.l.b16 %v505
    %v547 = vunpack.c.h.b16 %v505
    %v548 = vunpack.c.l.b16 %v506
    %v549 = vunpack.c.h.b16 %v506
    %v550 = vunpack.c.l.b16 %v507
    %v551 = vunpack.c.h.b16 %v507
    %v552 = vunpack.c.l.b16 %v508
    %v553 = vunpack.c.h.b16 %v508
    %v554 = vunpack.c.l.b16 %v509
    %v555 = vunpack.c.h.b16 %v509
    %v556 = vunpack.c.l.b16 %v510
    %v557 = vunpack.c.h.b16 %v510
    %v558 = vunpack.c.l.b16 %v511
    %v559 = vunpack.c.h.b16 %v511
    %v560 = vunpack.c.l.b16 %v512
    %v561 = vunpack.c.h.b16 %v512
    %v562 = vpack.c.b16 %v532, %v530
    %v563 = vpack.c.b16 %v533, %v531
    %v564 = vpack.c.b16 %v536, %v534
    %v565 = vpack.c.b16 %v537, %v535
    %v566 = vpack.c.b16 %v540, %v538
    %v567 = vpack.c.b16 %v541, %v539
    %v568 = vpack.c.b16 %v544, %v542
    %v569 = vpack.c.b16 %v545, %v543
    %v570 = vpack.c.b16 %v548, %v546
    %v571 = vpack.c.b16 %v549, %v547
    %v572 = vpack.c.b16 %v552, %v550
    %v573 = vpack.c.b16 %v553, %v551
    %v574 = vpack.c.b16 %v556, %v554
    %v575 = vpack.c.b16 %v557, %v555
    %v576 = vpack.c.b16 %v560, %v558
    %v577 = vpack.c.b16 %v561, %v559
    %594 = vmatprep.subr.bf16.mxu0 %v563
    %595 = vmatpush1.bf16.msra.mxu0 %v562
    %596 = vmatprep.subr.bf16.mxu0 %v565
    %597 = vmatpush1.bf16.msra.mxu0 %v564
    %598 = vmatprep.subr.bf16.mxu0 %v567
    %599 = vmatpush1.bf16.msra.mxu0 %v566
    %600 = vmatprep.subr.bf16.mxu0 %v569
    %601 = vmatpush1.bf16.msra.mxu0 %v568
    %602 = vmatprep.subr.bf16.mxu0 %v571
    %603 = vmatpush1.bf16.msra.mxu0 %v570
    %604 = vmatprep.subr.bf16.mxu0 %v573
    %605 = vmatpush1.bf16.msra.mxu0 %v572
    %606 = vmatprep.subr.bf16.mxu0 %v575
    %607 = vmatpush1.bf16.msra.mxu0 %v574
    %608 = vmatprep.subr.bf16.mxu0 %v577
    %609 = vmatpush1.bf16.msra.mxu0 %v576
    %610 = vmatprep.subr.bf16.mxu0 0
    %611 = vmatpush1.bf16.msra.mxu0 0
    %612 = vmatprep.subr.bf16.mxu0 0
    %613 = vmatpush1.bf16.msra.mxu0 0
    %614 = vmatprep.subr.bf16.mxu0 0
    %615 = vmatpush1.bf16.msra.mxu0 0
    %616 = vmatprep.subr.bf16.mxu0 0
    %617 = vmatpush1.bf16.msra.mxu0 0
    %618 = vmatprep.subr.bf16.mxu0 0
    %619 = vmatpush1.bf16.msra.mxu0 0
    %620 = vmatprep.subr.bf16.mxu0 0
    %621 = vmatpush1.bf16.msra.mxu0 0
    %622 = vmatprep.subr.bf16.mxu0 0
    %623 = vmatpush1.bf16.msra.mxu0 0
    %624 = vmatprep.subr.bf16.mxu0 0
    %625 = vmatpush1.bf16.msra.mxu0 0
    %626 = vmatprep.mubr.bf16.mxu0 0
    %627 = vmatmul.mubr.bf16.gmra.mrb[0].mxu0 %v513
    %v628 = vpop.f32.mrb[0].mxu0
    %v629 = vadd.f32 0.0, %v628
    %v630 = vpop.f32.mrb[0].mxu0
    %v631 = vadd.f32 0.0, %v630
    %v632 = vpop.f32.mrb[0].mxu0
    %v633 = vpop.f32.mrb[0].mxu0
    %634 = vdwg.mxu0
    %v635 = vlaneseq
    %v636 = vshrl.u32 %v635, 7
    %v637 = vsub.s32 3, %v636
    %v638 = vrot.slane %v92, %v637
    %v639 = vadd.f32 %v629, %v638
    %v640 = vmax.f32 %v639, 0.0
    %v641 = vadd.f32 %v640, %v631
    %642 = vst [vmem:[#allocation11] sm:$0xff] %v641
    %s643 = scalar_lea.vmem [#allocation7], 768
    %v644 = vld [vmem:[%s643] sm:$0xff]
    %v645 = vld [vmem:[%s643 + $0x8] sm:$0xff]
    %v646 = vld [vmem:[%s643 + $0x10] sm:$0xff]
    %v647 = vld [vmem:[%s643 + $0x18] sm:$0xff]
    %v648 = vld [vmem:[%s643 + $0x20] sm:$0xff]
    %v649 = vld [vmem:[%s643 + $0x28] sm:$0xff]
    %v650 = vld [vmem:[%s643 + $0x30] sm:$0xff]
    %v651 = vld [vmem:[%s643 + $0x38] sm:$0xff]
    %v652 = vld [vmem:[%s643 + $0x40] sm:$0xff]
    %v653 = vld [vmem:[%s643 + $0x48] sm:$0xff]
    %v654 = vld [vmem:[%s643 + $0x50] sm:$0xff]
    %v655 = vld [vmem:[%s643 + $0x58] sm:$0xff]
    %v656 = vld [vmem:[%s643 + $0x60] sm:$0xff]
    %v657 = vld [vmem:[%s643 + $0x68] sm:$0xff]
    %v658 = vld [vmem:[%s643 + $0x70] sm:$0xff]
    %v659 = vld [vmem:[%s643 + $0x78] sm:$0xff]
    %v660 = vpack.c.bf16 %v641, %v641
    %v661 = vlaneseq
    %v662 = vshrl.u32 %v661, 7
    %v663 = vsub.s32 1, %v662
    %v664 = vrot.slane %v93, %v663
    %v665 = vlaneseq
    %v666 = vshrl.u32 %v665, 7
    %v667 = vsub.s32 1, %v666
    %v668 = vrot.slane %v94, %v667
    %v685 = vunpack.c.l.b16 %v644
    %v686 = vunpack.c.h.b16 %v644
    %v687 = vunpack.c.l.b16 %v645
    %v688 = vunpack.c.h.b16 %v645
    %v689 = vunpack.c.l.b16 %v646
    %v690 = vunpack.c.h.b16 %v646
    %v691 = vunpack.c.l.b16 %v647
    %v692 = vunpack.c.h.b16 %v647
    %v693 = vunpack.c.l.b16 %v648
    %v694 = vunpack.c.h.b16 %v648
    %v695 = vunpack.c.l.b16 %v649
    %v696 = vunpack.c.h.b16 %v649
    %v697 = vunpack.c.l.b16 %v650
    %v698 = vunpack.c.h.b16 %v650
    %v699 = vunpack.c.l.b16 %v651
    %v700 = vunpack.c.h.b16 %v651
    %v701 = vunpack.c.l.b16 %v652
    %v702 = vunpack.c.h.b16 %v652
    %v703 = vunpack.c.l.b16 %v653
    %v704 = vunpack.c.h.b16 %v653
    %v705 = vunpack.c.l.b16 %v654
    %v706 = vunpack.c.h.b16 %v654
    %v707 = vunpack.c.l.b16 %v655
    %v708 = vunpack.c.h.b16 %v655
    %v709 = vunpack.c.l.b16 %v656
    %v710 = vunpack.c.h.b16 %v656
    %v711 = vunpack.c.l.b16 %v657
    %v712 = vunpack.c.h.b16 %v657
    %v713 = vunpack.c.l.b16 %v658
    %v714 = vunpack.c.h.b16 %v658
    %v715 = vunpack.c.l.b16 %v659
    %v716 = vunpack.c.h.b16 %v659
    %v717 = vpack.c.b16 %v687, %v685
    %v718 = vpack.c.b16 %v688, %v686
    %v719 = vpack.c.b16 %v691, %v689
    %v720 = vpack.c.b16 %v692, %v690
    %v721 = vpack.c.b16 %v695, %v693
    %v722 = vpack.c.b16 %v696, %v694
    %v723 = vpack.c.b16 %v699, %v697
    %v724 = vpack.c.b16 %v700, %v698
    %v725 = vpack.c.b16 %v703, %v701
    %v726 = vpack.c.b16 %v704, %v702
    %v727 = vpack.c.b16 %v707, %v705
    %v728 = vpack.c.b16 %v708, %v706
    %v729 = vpack.c.b16 %v711, %v709
    %v730 = vpack.c.b16 %v712, %v710
    %v731 = vpack.c.b16 %v715, %v713
    %v732 = vpack.c.b16 %v716, %v714
    %749 = vmatprep.subr.bf16.mxu0 %v718
    %750 = vmatpush1.bf16.msra.mxu0 %v717
    %751 = vmatprep.subr.bf16.mxu0 %v720
    %752 = vmatpush1.bf16.msra.mxu0 %v719
    %753 = vmatprep.subr.bf16.mxu0 %v722
    %754 = vmatpush1.bf16.msra.mxu0 %v721
    %755 = vmatprep.subr.bf16.mxu0 %v724
    %756 = vmatpush1.bf16.msra.mxu0 %v723
    %757 = vmatprep.subr.bf16.mxu0 %v726
    %758 = vmatpush1.bf16.msra.mxu0 %v725
    %759 = vmatprep.subr.bf16.mxu0 %v728
    %760 = vmatpush1.bf16.msra.mxu0 %v727
    %761 = vmatprep.subr.bf16.mxu0 %v730
    %762 = vmatpush1.bf16.msra.mxu0 %v729
    %763 = vmatprep.subr.bf16.mxu0 %v732
    %764 = vmatpush1.bf16.msra.mxu0 %v731
    %765 = vmatprep.subr.bf16.mxu0 0
    %766 = vmatpush1.bf16.msra.mxu0 0
    %767 = vmatprep.subr.bf16.mxu0 0
    %768 = vmatpush1.bf16.msra.mxu0 0
    %769 = vmatprep.subr.bf16.mxu0 0
    %770 = vmatpush1.bf16.msra.mxu0 0
    %771 = vmatprep.subr.bf16.mxu0 0
    %772 = vmatpush1.bf16.msra.mxu0 0
    %773 = vmatprep.subr.bf16.mxu0 0
    %774 = vmatpush1.bf16.msra.mxu0 0
    %775 = vmatprep.subr.bf16.mxu0 0
    %776 = vmatpush1.bf16.msra.mxu0 0
    %777 = vmatprep.subr.bf16.mxu0 0
    %778 = vmatpush1.bf16.msra.mxu0 0
    %779 = vmatprep.subr.bf16.mxu0 0
    %780 = vmatpush1.bf16.msra.mxu0 0
    %781 = vmatprep.mubr.bf16.mxu0 0
    %782 = vmatmul.mubr.bf16.gmra.mrb[0].mxu0 %v660
    %v783 = vpop.f32.mrb[0].mxu0
    %v784 = vadd.f32 %v664, %v783
    %v785 = vpop.f32.mrb[0].mxu0
    %v786 = vadd.f32 %v668, %v785
    %v787 = vpop.f32.mrb[0].mxu0
    %v788 = vpop.f32.mrb[0].mxu0
    %789 = vdwg.mxu0
    %v790 = vld [vmem:[#allocation8] sm:$0xff]
    %v791 = vld [vmem:[#allocation8 + $0x8] sm:$0xff]
    %v792 = vld [vmem:[#allocation8 + $0x10] sm:$0xff]
    %v793 = vld [vmem:[#allocation8 + $0x18] sm:$0xff]
    %v794 = vld [vmem:[#allocation8 + $0x20] sm:$0xff]
    %v795 = vld [vmem:[#allocation8 + $0x28] sm:$0xff]
    %v796 = vld [vmem:[#allocation8 + $0x30] sm:$0xff]
    %v797 = vld [vmem:[#allocation8 + $0x38] sm:$0xff]
    %v798 = vld [vmem:[#allocation8 + $0x40] sm:$0xff]
    %v799 = vld [vmem:[#allocation8 + $0x48] sm:$0xff]
    %v800 = vld [vmem:[#allocation8 + $0x50] sm:$0xff]
    %v801 = vld [vmem:[#allocation8 + $0x58] sm:$0xff]
    %v802 = vld [vmem:[#allocation8 + $0x60] sm:$0xff]
    %v803 = vld [vmem:[#allocation8 + $0x68] sm:$0xff]
    %v804 = vld [vmem:[#allocation8 + $0x70] sm:$0xff]
    %v805 = vld [vmem:[#allocation8 + $0x78] sm:$0xff]
    %v806 = vld [vmem:[#allocation8 + $0x80] sm:$0xff]
    %v807 = vld [vmem:[#allocation8 + $0x88] sm:$0xff]
    %v808 = vld [vmem:[#allocation8 + $0x90] sm:$0xff]
    %v809 = vld [vmem:[#allocation8 + $0x98] sm:$0xff]
    %v810 = vld [vmem:[#allocation8 + $0xa0] sm:$0xff]
    %v811 = vld [vmem:[#allocation8 + $0xa8] sm:$0xff]
    %v812 = vld [vmem:[#allocation8 + $0xb0] sm:$0xff]
    %v813 = vld [vmem:[#allocation8 + $0xb8] sm:$0xff]
    %v814 = vld [vmem:[#allocation8 + $0xc0] sm:$0xff]
    %v815 = vld [vmem:[#allocation8 + $0xc8] sm:$0xff]
    %v816 = vld [vmem:[#allocation8 + $0xd0] sm:$0xff]
    %v817 = vld [vmem:[#allocation8 + $0xd8] sm:$0xff]
    %v818 = vld [vmem:[#allocation8 + $0xe0] sm:$0xff]
    %v819 = vld [vmem:[#allocation8 + $0xe8] sm:$0xff]
    %v820 = vld [vmem:[#allocation8 + $0xf0] sm:$0xff]
    %v821 = vld [vmem:[#allocation8 + $0xf8] sm:$0xff]
    %v822 = vpack.c.bf16 %v784, %v784
    %v823 = vpack.c.bf16 %v786, %v786
    %v824 = vlaneseq
    %v825 = vshrl.u32 %v824, 7
    %v826 = vsub.s32 2, %v825
    %v827 = vrot.slane %v93, %v826
    %v828 = vlaneseq
    %v829 = vshrl.u32 %v828, 7
    %v830 = vsub.s32 2, %v829
    %v831 = vrot.slane %v94, %v830
    %v864 = vunpack.c.l.b16 %v790
    %v865 = vunpack.c.h.b16 %v790
    %v866 = vunpack.c.l.b16 %v791
    %v867 = vunpack.c.h.b16 %v791
    %v868 = vunpack.c.l.b16 %v792
    %v869 = vunpack.c.h.b16 %v792
    %v870 = vunpack.c.l.b16 %v793
    %v871 = vunpack.c.h.b16 %v793
    %v872 = vunpack.c.l.b16 %v794
    %v873 = vunpack.c.h.b16 %v794
    %v874 = vunpack.c.l.b16 %v795
    %v875 = vunpack.c.h.b16 %v795
    %v876 = vunpack.c.l.b16 %v796
    %v877 = vunpack.c.h.b16 %v796
    %v878 = vunpack.c.l.b16 %v797
    %v879 = vunpack.c.h.b16 %v797
    %v880 = vunpack.c.l.b16 %v798
    %v881 = vunpack.c.h.b16 %v798
    %v882 = vunpack.c.l.b16 %v799
    %v883 = vunpack.c.h.b16 %v799
    %v884 = vunpack.c.l.b16 %v800
    %v885 = vunpack.c.h.b16 %v800
    %v886 = vunpack.c.l.b16 %v801
    %v887 = vunpack.c.h.b16 %v801
    %v888 = vunpack.c.l.b16 %v802
    %v889 = vunpack.c.h.b16 %v802
    %v890 = vunpack.c.l.b16 %v803
    %v891 = vunpack.c.h.b16 %v803
    %v892 = vunpack.c.l.b16 %v804
    %v893 = vunpack.c.h.b16 %v804
    %v894 = vunpack.c.l.b16 %v805
    %v895 = vunpack.c.h.b16 %v805
    %v896 = vunpack.c.l.b16 %v806
    %v897 = vunpack.c.h.b16 %v806
    %v898 = vunpack.c.l.b16 %v807
    %v899 = vunpack.c.h.b16 %v807
    %v900 = vunpack.c.l.b16 %v808
    %v901 = vunpack.c.h.b16 %v808
    %v902 = vunpack.c.l.b16 %v809
    %v903 = vunpack.c.h.b16 %v809
    %v904 = vunpack.c.l.b16 %v810
    %v905 = vunpack.c.h.b16 %v810
    %v906 = vunpack.c.l.b16 %v811
    %v907 = vunpack.c.h.b16 %v811
    %v908 = vunpack.c.l.b16 %v812
    %v909 = vunpack.c.h.b16 %v812
    %v910 = vunpack.c.l.b16 %v813
    %v911 = vunpack.c.h.b16 %v813
    %v912 = vunpack.c.l.b16 %v814
    %v913 = vunpack.c.h.b16 %v814
    %v914 = vunpack.c.l.b16 %v815
    %v915 = vunpack.c.h.b16 %v815
    %v916 = vunpack.c.l.b16 %v816
    %v917 = vunpack.c.h.b16 %v816
    %v918 = vunpack.c.l.b16 %v817
    %v919 = vunpack.c.h.b16 %v817
    %v920 = vunpack.c.l.b16 %v818
    %v921 = vunpack.c.h.b16 %v818
    %v922 = vunpack.c.l.b16 %v819
    %v923 = vunpack.c.h.b16 %v819
    %v924 = vunpack.c.l.b16 %v820
    %v925 = vunpack.c.h.b16 %v820
    %v926 = vunpack.c.l.b16 %v821
    %v927 = vunpack.c.h.b16 %v821
    %v928 = vpack.c.b16 %v866, %v864
    %v929 = vpack.c.b16 %v867, %v865
    %v930 = vpack.c.b16 %v870, %v868
    %v931 = vpack.c.b16 %v871, %v869
    %v932 = vpack.c.b16 %v874, %v872
    %v933 = vpack.c.b16 %v875, %v873
    %v934 = vpack.c.b16 %v878, %v876
    %v935 = vpack.c.b16 %v879, %v877
    %v936 = vpack.c.b16 %v882, %v880
    %v937 = vpack.c.b16 %v883, %v881
    %v938 = vpack.c.b16 %v886, %v884
    %v939 = vpack.c.b16 %v887, %v885
    %v940 = vpack.c.b16 %v890, %v888
    %v941 = vpack.c.b16 %v891, %v889
    %v942 = vpack.c.b16 %v894, %v892
    %v943 = vpack.c.b16 %v895, %v893
    %v944 = vpack.c.b16 %v898, %v896
    %v945 = vpack.c.b16 %v899, %v897
    %v946 = vpack.c.b16 %v902, %v900
    %v947 = vpack.c.b16 %v903, %v901
    %v948 = vpack.c.b16 %v906, %v904
    %v949 = vpack.c.b16 %v907, %v905
    %v950 = vpack.c.b16 %v910, %v908
    %v951 = vpack.c.b16 %v911, %v909
    %v952 = vpack.c.b16 %v914, %v912
    %v953 = vpack.c.b16 %v915, %v913
    %v954 = vpack.c.b16 %v918, %v916
    %v955 = vpack.c.b16 %v919, %v917
    %v956 = vpack.c.b16 %v922, %v920
    %v957 = vpack.c.b16 %v923, %v921
    %v958 = vpack.c.b16 %v926, %v924
    %v959 = vpack.c.b16 %v927, %v925
    %992 = vmatprep.subr.bf16.mxu0 %v929
    %993 = vmatpush1.bf16.msra.mxu0 %v928
    %994 = vmatprep.subr.bf16.mxu0 %v931
    %995 = vmatpush1.bf16.msra.mxu0 %v930
    %996 = vmatprep.subr.bf16.mxu0 %v933
    %997 = vmatpush1.bf16.msra.mxu0 %v932
    %998 = vmatprep.subr.bf16.mxu0 %v935
    %999 = vmatpush1.bf16.msra.mxu0 %v934
    %1000 = vmatprep.subr.bf16.mxu0 %v937
    %1001 = vmatpush1.bf16.msra.mxu0 %v936
    %1002 = vmatprep.subr.bf16.mxu0 %v939
    %1003 = vmatpush1.bf16.msra.mxu0 %v938
    %1004 = vmatprep.subr.bf16.mxu0 %v941
    %1005 = vmatpush1.bf16.msra.mxu0 %v940
    %1006 = vmatprep.subr.bf16.mxu0 %v943
    %1007 = vmatpush1.bf16.msra.mxu0 %v942
    %1008 = vmatprep.subr.bf16.mxu0 %v945
    %1009 = vmatpush1.bf16.msra.mxu0 %v944
    %1010 = vmatprep.subr.bf16.mxu0 %v947
    %1011 = vmatpush1.bf16.msra.mxu0 %v946
    %1012 = vmatprep.subr.bf16.mxu0 %v949
    %1013 = vmatpush1.bf16.msra.mxu0 %v948
    %1014 = vmatprep.subr.bf16.mxu0 %v951
    %1015 = vmatpush1.bf16.msra.mxu0 %v950
    %1016 = vmatprep.subr.bf16.mxu0 %v953
    %1017 = vmatpush1.bf16.msra.mxu0 %v952
    %1018 = vmatprep.subr.bf16.mxu0 %v955
    %1019 = vmatpush1.bf16.msra.mxu0 %v954
    %1020 = vmatprep.subr.bf16.mxu0 %v957
    %1021 = vmatpush1.bf16.msra.mxu0 %v956
    %1022 = vmatprep.subr.bf16.mxu0 %v959
    %1023 = vmatpush1.bf16.msra.mxu0 %v958
    %1024 = vmatprep.mubr.bf16.mxu0 %v823
    %1025 = vmatmul.mubr.bf16.gmra.mrb[0].mxu0 %v822
    %v1026 = vpop.f32.mrb[0].mxu0
    %v1027 = vadd.f32 %v827, %v1026
    %v1028 = vpop.f32.mrb[0].mxu0
    %v1029 = vadd.f32 %v831, %v1028
    %v1030 = vpop.f32.mrb[0].mxu0
    %v1031 = vpop.f32.mrb[0].mxu0
    %1032 = vdwg.mxu0
    %v1033 = vmax.f32 %v1027, 0.0
    %v1034 = vmax.f32 %v1029, 0.0
    %v1035 = vadd.f32 %v1033, %v784
    %v1036 = vadd.f32 %v1034, %v786
    %s1037 = scalar_lea.vmem [#allocation8], 256
    %v1038 = vld [vmem:[%s1037] sm:$0xff]
    %v1039 = vld [vmem:[%s1037 + $0x8] sm:$0xff]
    %v1040 = vld [vmem:[%s1037 + $0x10] sm:$0xff]
    %v1041 = vld [vmem:[%s1037 + $0x18] sm:$0xff]
    %v1042 = vld [vmem:[%s1037 + $0x20] sm:$0xff]
    %v1043 = vld [vmem:[%s1037 + $0x28] sm:$0xff]
    %v1044 = vld [vmem:[%s1037 + $0x30] sm:$0xff]
    %v1045 = vld [vmem:[%s1037 + $0x38] sm:$0xff]
    %v1046 = vld [vmem:[%s1037 + $0x40] sm:$0xff]
    %v1047 = vld [vmem:[%s1037 + $0x48] sm:$0xff]
    %v1048 = vld [vmem:[%s1037 + $0x50] sm:$0xff]
    %v1049 = vld [vmem:[%s1037 + $0x58] sm:$0xff]
    %v1050 = vld [vmem:[%s1037 + $0x60] sm:$0xff]
    %v1051 = vld [vmem:[%s1037 + $0x68] sm:$0xff]
    %v1052 = vld [vmem:[%s1037 + $0x70] sm:$0xff]
    %v1053 = vld [vmem:[%s1037 + $0x78] sm:$0xff]
    %v1054 = vld [vmem:[%s1037 + $0x80] sm:$0xff]
    %v1055 = vld [vmem:[%s1037 + $0x88] sm:$0xff]
    %v1056 = vld [vmem:[%s1037 + $0x90] sm:$0xff]
    %v1057 = vld [vmem:[%s1037 + $0x98] sm:$0xff]
    %v1058 = vld [vmem:[%s1037 + $0xa0] sm:$0xff]
    %v1059 = vld [vmem:[%s1037 + $0xa8] sm:$0xff]
    %v1060 = vld [vmem:[%s1037 + $0xb0] sm:$0xff]
    %v1061 = vld [vmem:[%s1037 + $0xb8] sm:$0xff]
    %v1062 = vld [vmem:[%s1037 + $0xc0] sm:$0xff]
    %v1063 = vld [vmem:[%s1037 + $0xc8] sm:$0xff]
    %v1064 = vld [vmem:[%s1037 + $0xd0] sm:$0xff]
    %v1065 = vld [vmem:[%s1037 + $0xd8] sm:$0xff]
    %v1066 = vld [vmem:[%s1037 + $0xe0] sm:$0xff]
    %v1067 = vld [vmem:[%s1037 + $0xe8] sm:$0xff]
    %v1068 = vld [vmem:[%s1037 + $0xf0] sm:$0xff]
    %v1069 = vld [vmem:[%s1037 + $0xf8] sm:$0xff]
    %v1070 = vpack.c.bf16 %v1035, %v1035
    %v1071 = vpack.c.bf16 %v1036, %v1036
    %v1072 = vlaneseq
    %v1073 = vshrl.u32 %v1072, 7
    %v1074 = vsub.s32 3, %v1073
    %v1075 = vrot.slane %v93, %v1074
    %v1076 = vlaneseq
    %v1077 = vshrl.u32 %v1076, 7
    %v1078 = vsub.s32 3, %v1077
    %v1079 = vrot.slane %v94, %v1078
    %v1112 = vunpack.c.l.b16 %v1038
    %v1113 = vunpack.c.h.b16 %v1038
    %v1114 = vunpack.c.l.b16 %v1039
    %v1115 = vunpack.c.h.b16 %v1039
    %v1116 = vunpack.c.l.b16 %v1040
    %v1117 = vunpack.c.h.b16 %v1040
    %v1118 = vunpack.c.l.b16 %v1041
    %v1119 = vunpack.c.h.b16 %v1041
    %v1120 = vunpack.c.l.b16 %v1042
    %v1121 = vunpack.c.h.b16 %v1042
    %v1122 = vunpack.c.l.b16 %v1043
    %v1123 = vunpack.c.h.b16 %v1043
    %v1124 = vunpack.c.l.b16 %v1044
    %v1125 = vunpack.c.h.b16 %v1044
    %v1126 = vunpack.c.l.b16 %v1045
    %v1127 = vunpack.c.h.b16 %v1045
    %v1128 = vunpack.c.l.b16 %v1046
    %v1129 = vunpack.c.h.b16 %v1046
    %v1130 = vunpack.c.l.b16 %v1047
    %v1131 = vunpack.c.h.b16 %v1047
    %v1132 = vunpack.c.l.b16 %v1048
    %v1133 = vunpack.c.h.b16 %v1048
    %v1134 = vunpack.c.l.b16 %v1049
    %v1135 = vunpack.c.h.b16 %v1049
    %v1136 = vunpack.c.l.b16 %v1050
    %v1137 = vunpack.c.h.b16 %v1050
    %v1138 = vunpack.c.l.b16 %v1051
    %v1139 = vunpack.c.h.b16 %v1051
    %v1140 = vunpack.c.l.b16 %v1052
    %v1141 = vunpack.c.h.b16 %v1052
    %v1142 = vunpack.c.l.b16 %v1053
    %v1143 = vunpack.c.h.b16 %v1053
    %v1144 = vunpack.c.l.b16 %v1054
    %v1145 = vunpack.c.h.b16 %v1054
    %v1146 = vunpack.c.l.b16 %v1055
    %v1147 = vunpack.c.h.b16 %v1055
    %v1148 = vunpack.c.l.b16 %v1056
    %v1149 = vunpack.c.h.b16 %v1056
    %v1150 = vunpack.c.l.b16 %v1057
    %v1151 = vunpack.c.h.b16 %v1057
    %v1152 = vunpack.c.l.b16 %v1058
    %v1153 = vunpack.c.h.b16 %v1058
    %v1154 = vunpack.c.l.b16 %v1059
    %v1155 = vunpack.c.h.b16 %v1059
    %v1156 = vunpack.c.l.b16 %v1060
    %v1157 = vunpack.c.h.b16 %v1060
    %v1158 = vunpack.c.l.b16 %v1061
    %v1159 = vunpack.c.h.b16 %v1061
    %v1160 = vunpack.c.l.b16 %v1062
    %v1161 = vunpack.c.h.b16 %v1062
    %v1162 = vunpack.c.l.b16 %v1063
    %v1163 = vunpack.c.h.b16 %v1063
    %v1164 = vunpack.c.l.b16 %v1064
    %v1165 = vunpack.c.h.b16 %v1064
    %v1166 = vunpack.c.l.b16 %v1065
    %v1167 = vunpack.c.h.b16 %v1065
    %v1168 = vunpack.c.l.b16 %v1066
    %v1169 = vunpack.c.h.b16 %v1066
    %v1170 = vunpack.c.l.b16 %v1067
    %v1171 = vunpack.c.h.b16 %v1067
    %v1172 = vunpack.c.l.b16 %v1068
    %v1173 = vunpack.c.h.b16 %v1068
    %v1174 = vunpack.c.l.b16 %v1069
    %v1175 = vunpack.c.h.b16 %v1069
    %v1176 = vpack.c.b16 %v1114, %v1112
    %v1177 = vpack.c.b16 %v1115, %v1113
    %v1178 = vpack.c.b16 %v1118, %v1116
    %v1179 = vpack.c.b16 %v1119, %v1117
    %v1180 = vpack.c.b16 %v1122, %v1120
    %v1181 = vpack.c.b16 %v1123, %v1121
    %v1182 = vpack.c.b16 %v1126, %v1124
    %v1183 = vpack.c.b16 %v1127, %v1125
    %v1184 = vpack.c.b16 %v1130, %v1128
    %v1185 = vpack.c.b16 %v1131, %v1129
    %v1186 = vpack.c.b16 %v1134, %v1132
    %v1187 = vpack.c.b16 %v1135, %v1133
    %v1188 = vpack.c.b16 %v1138, %v1136
    %v1189 = vpack.c.b16 %v1139, %v1137
    %v1190 = vpack.c.b16 %v1142, %v1140
    %v1191 = vpack.c.b16 %v1143, %v1141
    %v1192 = vpack.c.b16 %v1146, %v1144
    %v1193 = vpack.c.b16 %v1147, %v1145
    %v1194 = vpack.c.b16 %v1150, %v1148
    %v1195 = vpack.c.b16 %v1151, %v1149
    %v1196 = vpack.c.b16 %v1154, %v1152
    %v1197 = vpack.c.b16 %v1155, %v1153
    %v1198 = vpack.c.b16 %v1158, %v1156
    %v1199 = vpack.c.b16 %v1159, %v1157
    %v1200 = vpack.c.b16 %v1162, %v1160
    %v1201 = vpack.c.b16 %v1163, %v1161
    %v1202 = vpack.c.b16 %v1166, %v1164
    %v1203 = vpack.c.b16 %v1167, %v1165
    %v1204 = vpack.c.b16 %v1170, %v1168
    %v1205 = vpack.c.b16 %v1171, %v1169
    %v1206 = vpack.c.b16 %v1174, %v1172
    %v1207 = vpack.c.b16 %v1175, %v1173
    %1240 = vmatprep.subr.bf16.mxu0 %v1177
    %1241 = vmatpush1.bf16.msra.mxu0 %v1176
    %1242 = vmatprep.subr.bf16.mxu0 %v1179
    %1243 = vmatpush1.bf16.msra.mxu0 %v1178
    %1244 = vmatprep.subr.bf16.mxu0 %v1181
    %1245 = vmatpush1.bf16.msra.mxu0 %v1180
    %1246 = vmatprep.subr.bf16.mxu0 %v1183
    %1247 = vmatpush1.bf16.msra.mxu0 %v1182
    %1248 = vmatprep.subr.bf16.mxu0 %v1185
    %1249 = vmatpush1.bf16.msra.mxu0 %v1184
    %1250 = vmatprep.subr.bf16.mxu0 %v1187
    %1251 = vmatpush1.bf16.msra.mxu0 %v1186
    %1252 = vmatprep.subr.bf16.mxu0 %v1189
    %1253 = vmatpush1.bf16.msra.mxu0 %v1188
    %1254 = vmatprep.subr.bf16.mxu0 %v1191
    %1255 = vmatpush1.bf16.msra.mxu0 %v1190
    %1256 = vmatprep.subr.bf16.mxu0 %v1193
    %1257 = vmatpush1.bf16.msra.mxu0 %v1192
    %1258 = vmatprep.subr.bf16.mxu0 %v1195
    %1259 = vmatpush1.bf16.msra.mxu0 %v1194
    %1260 = vmatprep.subr.bf16.mxu0 %v1197
    %1261 = vmatpush1.bf16.msra.mxu0 %v1196
    %1262 = vmatprep.subr.bf16.mxu0 %v1199
    %1263 = vmatpush1.bf16.msra.mxu0 %v1198
    %1264 = vmatprep.subr.bf16.mxu0 %v1201
    %1265 = vmatpush1.bf16.msra.mxu0 %v1200
    %1266 = vmatprep.subr.bf16.mxu0 %v1203
    %1267 = vmatpush1.bf16.msra.mxu0 %v1202
    %1268 = vmatprep.subr.bf16.mxu0 %v1205
    %1269 = vmatpush1.bf16.msra.mxu0 %v1204
    %1270 = vmatprep.subr.bf16.mxu0 %v1207
    %1271 = vmatpush1.bf16.msra.mxu0 %v1206
    %1272 = vmatprep.mubr.bf16.mxu0 %v1071
    %1273 = vmatmul.mubr.bf16.gmra.mrb[0].mxu0 %v1070
    %v1274 = vpop.f32.mrb[0].mxu0
    %v1275 = vadd.f32 %v1075, %v1274
    %v1276 = vpop.f32.mrb[0].mxu0
    %v1277 = vadd.f32 %v1079, %v1276
    %v1278 = vpop.f32.mrb[0].mxu0
    %v1279 = vpop.f32.mrb[0].mxu0
    %1280 = vdwg.mxu0
    %v1281 = vmax.f32 %v1275, 0.0
    %v1282 = vmax.f32 %v1277, 0.0
    %v1283 = vadd.f32 %v1281, %v1035
    %v1284 = vadd.f32 %v1282, %v1036
    %s1285 = scalar_lea.vmem [#allocation8], 512
    %v1286 = vld [vmem:[%s1285] sm:$0xff]
    %v1287 = vld [vmem:[%s1285 + $0x8] sm:$0xff]
    %v1288 = vld [vmem:[%s1285 + $0x10] sm:$0xff]
    %v1289 = vld [vmem:[%s1285 + $0x18] sm:$0xff]
    %v1290 = vld [vmem:[%s1285 + $0x20] sm:$0xff]
    %v1291 = vld [vmem:[%s1285 + $0x28] sm:$0xff]
    %v1292 = vld [vmem:[%s1285 + $0x30] sm:$0xff]
    %v1293 = vld [vmem:[%s1285 + $0x38] sm:$0xff]
    %v1294 = vld [vmem:[%s1285 + $0x40] sm:$0xff]
    %v1295 = vld [vmem:[%s1285 + $0x48] sm:$0xff]
    %v1296 = vld [vmem:[%s1285 + $0x50] sm:$0xff]
    %v1297 = vld [vmem:[%s1285 + $0x58] sm:$0xff]
    %v1298 = vld [vmem:[%s1285 + $0x60] sm:$0xff]
    %v1299 = vld [vmem:[%s1285 + $0x68] sm:$0xff]
    %v1300 = vld [vmem:[%s1285 + $0x70] sm:$0xff]
    %v1301 = vld [vmem:[%s1285 + $0x78] sm:$0xff]
    %v1302 = vld [vmem:[%s1285 + $0x80] sm:$0xff]
    %v1303 = vld [vmem:[%s1285 + $0x88] sm:$0xff]
    %v1304 = vld [vmem:[%s1285 + $0x90] sm:$0xff]
    %v1305 = vld [vmem:[%s1285 + $0x98] sm:$0xff]
    %v1306 = vld [vmem:[%s1285 + $0xa0] sm:$0xff]
    %v1307 = vld [vmem:[%s1285 + $0xa8] sm:$0xff]
    %v1308 = vld [vmem:[%s1285 + $0xb0] sm:$0xff]
    %v1309 = vld [vmem:[%s1285 + $0xb8] sm:$0xff]
    %v1310 = vld [vmem:[%s1285 + $0xc0] sm:$0xff]
    %v1311 = vld [vmem:[%s1285 + $0xc8] sm:$0xff]
    %v1312 = vld [vmem:[%s1285 + $0xd0] sm:$0xff]
    %v1313 = vld [vmem:[%s1285 + $0xd8] sm:$0xff]
    %v1314 = vld [vmem:[%s1285 + $0xe0] sm:$0xff]
    %v1315 = vld [vmem:[%s1285 + $0xe8] sm:$0xff]
    %v1316 = vld [vmem:[%s1285 + $0xf0] sm:$0xff]
    %v1317 = vld [vmem:[%s1285 + $0xf8] sm:$0xff]
    %v1318 = vpack.c.bf16 %v1283, %v1283
    %v1319 = vpack.c.bf16 %v1284, %v1284
    %v1320 = vlaneseq
    %v1321 = vshrl.u32 %v1320, 7
    %v1322 = vsub.s32 4, %v1321
    %v1323 = vrot.slane %v93, %v1322
    %v1324 = vlaneseq
    %v1325 = vshrl.u32 %v1324, 7
    %v1326 = vsub.s32 4, %v1325
    %v1327 = vrot.slane %v94, %v1326
    %v1360 = vunpack.c.l.b16 %v1286
    %v1361 = vunpack.c.h.b16 %v1286
    %v1362 = vunpack.c.l.b16 %v1287
    %v1363 = vunpack.c.h.b16 %v1287
    %v1364 = vunpack.c.l.b16 %v1288
    %v1365 = vunpack.c.h.b16 %v1288
    %v1366 = vunpack.c.l.b16 %v1289
    %v1367 = vunpack.c.h.b16 %v1289
    %v1368 = vunpack.c.l.b16 %v1290
    %v1369 = vunpack.c.h.b16 %v1290
    %v1370 = vunpack.c.l.b16 %v1291
    %v1371 = vunpack.c.h.b16 %v1291
    %v1372 = vunpack.c.l.b16 %v1292
    %v1373 = vunpack.c.h.b16 %v1292
    %v1374 = vunpack.c.l.b16 %v1293
    %v1375 = vunpack.c.h.b16 %v1293
    %v1376 = vunpack.c.l.b16 %v1294
    %v1377 = vunpack.c.h.b16 %v1294
    %v1378 = vunpack.c.l.b16 %v1295
    %v1379 = vunpack.c.h.b16 %v1295
    %v1380 = vunpack.c.l.b16 %v1296
    %v1381 = vunpack.c.h.b16 %v1296
    %v1382 = vunpack.c.l.b16 %v1297
    %v1383 = vunpack.c.h.b16 %v1297
    %v1384 = vunpack.c.l.b16 %v1298
    %v1385 = vunpack.c.h.b16 %v1298
    %v1386 = vunpack.c.l.b16 %v1299
    %v1387 = vunpack.c.h.b16 %v1299
    %v1388 = vunpack.c.l.b16 %v1300
    %v1389 = vunpack.c.h.b16 %v1300
    %v1390 = vunpack.c.l.b16 %v1301
    %v1391 = vunpack.c.h.b16 %v1301
    %v1392 = vunpack.c.l.b16 %v1302
    %v1393 = vunpack.c.h.b16 %v1302
    %v1394 = vunpack.c.l.b16 %v1303
    %v1395 = vunpack.c.h.b16 %v1303
    %v1396 = vunpack.c.l.b16 %v1304
    %v1397 = vunpack.c.h.b16 %v1304
    %v1398 = vunpack.c.l.b16 %v1305
    %v1399 = vunpack.c.h.b16 %v1305
    %v1400 = vunpack.c.l.b16 %v1306
    %v1401 = vunpack.c.h.b16 %v1306
    %v1402 = vunpack.c.l.b16 %v1307
    %v1403 = vunpack.c.h.b16 %v1307
    %v1404 = vunpack.c.l.b16 %v1308
    %v1405 = vunpack.c.h.b16 %v1308
    %v1406 = vunpack.c.l.b16 %v1309
    %v1407 = vunpack.c.h.b16 %v1309
    %v1408 = vunpack.c.l.b16 %v1310
    %v1409 = vunpack.c.h.b16 %v1310
    %v1410 = vunpack.c.l.b16 %v1311
    %v1411 = vunpack.c.h.b16 %v1311
    %v1412 = vunpack.c.l.b16 %v1312
    %v1413 = vunpack.c.h.b16 %v1312
    %v1414 = vunpack.c.l.b16 %v1313
    %v1415 = vunpack.c.h.b16 %v1313
    %v1416 = vunpack.c.l.b16 %v1314
    %v1417 = vunpack.c.h.b16 %v1314
    %v1418 = vunpack.c.l.b16 %v1315
    %v1419 = vunpack.c.h.b16 %v1315
    %v1420 = vunpack.c.l.b16 %v1316
    %v1421 = vunpack.c.h.b16 %v1316
    %v1422 = vunpack.c.l.b16 %v1317
    %v1423 = vunpack.c.h.b16 %v1317
    %v1424 = vpack.c.b16 %v1362, %v1360
    %v1425 = vpack.c.b16 %v1363, %v1361
    %v1426 = vpack.c.b16 %v1366, %v1364
    %v1427 = vpack.c.b16 %v1367, %v1365
    %v1428 = vpack.c.b16 %v1370, %v1368
    %v1429 = vpack.c.b16 %v1371, %v1369
    %v1430 = vpack.c.b16 %v1374, %v1372
    %v1431 = vpack.c.b16 %v1375, %v1373
    %v1432 = vpack.c.b16 %v1378, %v1376
    %v1433 = vpack.c.b16 %v1379, %v1377
    %v1434 = vpack.c.b16 %v1382, %v1380
    %v1435 = vpack.c.b16 %v1383, %v1381
    %v1436 = vpack.c.b16 %v1386, %v1384
    %v1437 = vpack.c.b16 %v1387, %v1385
    %v1438 = vpack.c.b16 %v1390, %v1388
    %v1439 = vpack.c.b16 %v1391, %v1389
    %v1440 = vpack.c.b16 %v1394, %v1392
    %v1441 = vpack.c.b16 %v1395, %v1393
    %v1442 = vpack.c.b16 %v1398, %v1396
    %v1443 = vpack.c.b16 %v1399, %v1397
    %v1444 = vpack.c.b16 %v1402, %v1400
    %v1445 = vpack.c.b16 %v1403, %v1401
    %v1446 = vpack.c.b16 %v1406, %v1404
    %v1447 = vpack.c.b16 %v1407, %v1405
    %v1448 = vpack.c.b16 %v1410, %v1408
    %v1449 = vpack.c.b16 %v1411, %v1409
    %v1450 = vpack.c.b16 %v1414, %v1412
    %v1451 = vpack.c.b16 %v1415, %v1413
    %v1452 = vpack.c.b16 %v1418, %v1416
    %v1453 = vpack.c.b16 %v1419, %v1417
    %v1454 = vpack.c.b16 %v1422, %v1420
    %v1455 = vpack.c.b16 %v1423, %v1421
    %1488 = vmatprep.subr.bf16.mxu0 %v1425
    %1489 = vmatpush1.bf16.msra.mxu0 %v1424
    %1490 = vmatprep.subr.bf16.mxu0 %v1427
    %1491 = vmatpush1.bf16.msra.mxu0 %v1426
    %1492 = vmatprep.subr.bf16.mxu0 %v1429
    %1493 = vmatpush1.bf16.msra.mxu0 %v1428
    %1494 = vmatprep.subr.bf16.mxu0 %v1431
    %1495 = vmatpush1.bf16.msra.mxu0 %v1430
    %1496 = vmatprep.subr.bf16.mxu0 %v1433
    %1497 = vmatpush1.bf16.msra.mxu0 %v1432
    %1498 = vmatprep.subr.bf16.mxu0 %v1435
    %1499 = vmatpush1.bf16.msra.mxu0 %v1434
    %1500 = vmatprep.subr.bf16.mxu0 %v1437
    %1501 = vmatpush1.bf16.msra.mxu0 %v1436
    %1502 = vmatprep.subr.bf16.mxu0 %v1439
    %1503 = vmatpush1.bf16.msra.mxu0 %v1438
    %1504 = vmatprep.subr.bf16.mxu0 %v1441
    %1505 = vmatpush1.bf16.msra.mxu0 %v1440
    %1506 = vmatprep.subr.bf16.mxu0 %v1443
    %1507 = vmatpush1.bf16.msra.mxu0 %v1442
    %1508 = vmatprep.subr.bf16.mxu0 %v1445
    %1509 = vmatpush1.bf16.msra.mxu0 %v1444
    %1510 = vmatprep.subr.bf16.mxu0 %v1447
    %1511 = vmatpush1.bf16.msra.mxu0 %v1446
    %1512 = vmatprep.subr.bf16.mxu0 %v1449
    %1513 = vmatpush1.bf16.msra.mxu0 %v1448
    %1514 = vmatprep.subr.bf16.mxu0 %v1451
    %1515 = vmatpush1.bf16.msra.mxu0 %v1450
    %1516 = vmatprep.subr.bf16.mxu0 %v1453
    %1517 = vmatpush1.bf16.msra.mxu0 %v1452
    %1518 = vmatprep.subr.bf16.mxu0 %v1455
    %1519 = vmatpush1.bf16.msra.mxu0 %v1454
    %1520 = vmatprep.mubr.bf16.mxu0 %v1319
    %1521 = vmatmul.mubr.bf16.gmra.mrb[0].mxu0 %v1318
    %v1522 = vpop.f32.mrb[0].mxu0
    %v1523 = vadd.f32 %v1323, %v1522
    %v1524 = vpop.f32.mrb[0].mxu0
    %v1525 = vadd.f32 %v1327, %v1524
    %v1526 = vpop.f32.mrb[0].mxu0
    %v1527 = vpop.f32.mrb[0].mxu0
    %1528 = vdwg.mxu0
    %1529 = vst [vmem:[#allocation12] sm:$0xff] %v1523
    %1530 = vst [vmem:[#allocation12 + $0x8] sm:$0xff] %v1525
    %s1531 = scalar_lea.vmem [#allocation5], 64
    %v1532 = vld [vmem:[%s1531] sm:$0xf]
    %v1533 = vld [vmem:[%s1531 + $0x4] sm:$0xf]
    %v1534 = vld [vmem:[%s1531 + $0x8] sm:$0xf]
    %v1535 = vld [vmem:[%s1531 + $0xc] sm:$0xf]
    %v1536 = vld [vmem:[%s1531 + $0x10] sm:$0xf]
    %v1537 = vld [vmem:[%s1531 + $0x14] sm:$0xf]
    %v1538 = vld [vmem:[%s1531 + $0x18] sm:$0xf]
    %v1539 = vld [vmem:[%s1531 + $0x1c] sm:$0xf]
    %v1540 = vld [vmem:[%s1531 + $0x20] sm:$0xf]
    %v1541 = vld [vmem:[%s1531 + $0x24] sm:$0xf]
    %v1542 = vld [vmem:[%s1531 + $0x28] sm:$0xf]
    %v1543 = vld [vmem:[%s1531 + $0x2c] sm:$0xf]
    %v1544 = vld [vmem:[%s1531 + $0x30] sm:$0xf]
    %v1545 = vld [vmem:[%s1531 + $0x34] sm:$0xf]
    %v1546 = vld [vmem:[%s1531 + $0x38] sm:$0xf]
    %v1547 = vld [vmem:[%s1531 + $0x3c] sm:$0xf]
    %v1548 = vlaneseq
    %v1549 = vshrl.u32 %v1548, 7
    %v1550 = vsub.s32 4, %v1549
    %v1551 = vrot.slane %v92, %v1550
    %v1568 = vunpack.c.l.b16 %v1532
    %v1569 = vunpack.c.l.b16 %v1533
    %v1570 = vunpack.c.l.b16 %v1534
    %v1571 = vunpack.c.l.b16 %v1535
    %v1572 = vunpack.c.l.b16 %v1536
    %v1573 = vunpack.c.l.b16 %v1537
    %v1574 = vunpack.c.l.b16 %v1538
    %v1575 = vunpack.c.l.b16 %v1539
    %v1576 = vunpack.c.l.b16 %v1540
    %v1577 = vunpack.c.l.b16 %v1541
    %v1578 = vunpack.c.l.b16 %v1542
    %v1579 = vunpack.c.l.b16 %v1543
    %v1580 = vunpack.c.l.b16 %v1544
    %v1581 = vunpack.c.l.b16 %v1545
    %v1582 = vunpack.c.l.b16 %v1546
    %v1583 = vunpack.c.l.b16 %v1547
    %v1584 = vpack.c.b16 %v1569, %v1568
    %v1585 = vpack.c.b16 %v1571, %v1570
    %v1586 = vpack.c.b16 %v1573, %v1572
    %v1587 = vpack.c.b16 %v1575, %v1574
    %v1588 = vpack.c.b16 %v1577, %v1576
    %v1589 = vpack.c.b16 %v1579, %v1578
    %v1590 = vpack.c.b16 %v1581, %v1580
    %v1591 = vpack.c.b16 %v1583, %v1582
    %1600 = vmatprep.subr.bf16.mxu0 0
    %1601 = vmatpush1.bf16.msra.mxu0 %v1584
    %1602 = vmatprep.subr.bf16.mxu0 0
    %1603 = vmatpush1.bf16.msra.mxu0 %v1585
    %1604 = vmatprep.subr.bf16.mxu0 0
    %1605 = vmatpush1.bf16.msra.mxu0 %v1586
    %1606 = vmatprep.subr.bf16.mxu0 0
    %1607 = vmatpush1.bf16.msra.mxu0 %v1587
    %1608 = vmatprep.subr.bf16.mxu0 0
    %1609 = vmatpush1.bf16.msra.mxu0 %v1588
    %1610 = vmatprep.subr.bf16.mxu0 0
    %1611 = vmatpush1.bf16.msra.mxu0 %v1589
    %1612 = vmatprep.subr.bf16.mxu0 0
    %1613 = vmatpush1.bf16.msra.mxu0 %v1590
    %1614 = vmatprep.subr.bf16.mxu0 0
    %1615 = vmatpush1.bf16.msra.mxu0 %v1591
    %1616 = vmatprep.subr.bf16.mxu0 0
    %1617 = vmatpush1.bf16.msra.mxu0 0
    %1618 = vmatprep.subr.bf16.mxu0 0
    %1619 = vmatpush1.bf16.msra.mxu0 0
    %1620 = vmatprep.subr.bf16.mxu0 0
    %1621 = vmatpush1.bf16.msra.mxu0 0
    %1622 = vmatprep.subr.bf16.mxu0 0
    %1623 = vmatpush1.bf16.msra.mxu0 0
    %1624 = vmatprep.subr.bf16.mxu0 0
    %1625 = vmatpush1.bf16.msra.mxu0 0
    %1626 = vmatprep.subr.bf16.mxu0 0
    %1627 = vmatpush1.bf16.msra.mxu0 0
    %1628 = vmatprep.subr.bf16.mxu0 0
    %1629 = vmatpush1.bf16.msra.mxu0 0
    %1630 = vmatprep.subr.bf16.mxu0 0
    %1631 = vmatpush1.bf16.msra.mxu0 0
    %1632 = vmatprep.mubr.bf16.mxu0 0
    %1633 = vmatmul.mubr.bf16.gmra.mrb[0].mxu0 %v660
    %v1634 = vpop.f32.mrb[0].mxu0
    %v1635 = vadd.f32 %v1551, %v1634
    %v1636 = vpop.f32.mrb[0].mxu0
    %v1637 = vpop.f32.mrb[0].mxu0
    %v1638 = vpop.f32.mrb[0].mxu0
    %1639 = vdwg.mxu0
    %s1640 = scalar_lea.vmem [#allocation7], 384
    %v1641 = vld [vmem:[%s1640] sm:$0xff]
    %v1642 = vld [vmem:[%s1640 + $0x8] sm:$0xff]
    %v1643 = vld [vmem:[%s1640 + $0x10] sm:$0xff]
    %v1644 = vld [vmem:[%s1640 + $0x18] sm:$0xff]
    %v1645 = vld [vmem:[%s1640 + $0x20] sm:$0xff]
    %v1646 = vld [vmem:[%s1640 + $0x28] sm:$0xff]
    %v1647 = vld [vmem:[%s1640 + $0x30] sm:$0xff]
    %v1648 = vld [vmem:[%s1640 + $0x38] sm:$0xff]
    %v1649 = vld [vmem:[%s1640 + $0x40] sm:$0xff]
    %v1650 = vld [vmem:[%s1640 + $0x48] sm:$0xff]
    %v1651 = vld [vmem:[%s1640 + $0x50] sm:$0xff]
    %v1652 = vld [vmem:[%s1640 + $0x58] sm:$0xff]
    %v1653 = vld [vmem:[%s1640 + $0x60] sm:$0xff]
    %v1654 = vld [vmem:[%s1640 + $0x68] sm:$0xff]
    %v1655 = vld [vmem:[%s1640 + $0x70] sm:$0xff]
    %v1656 = vld [vmem:[%s1640 + $0x78] sm:$0xff]
    %v1657 = vpack.c.bf16 %v1635, %v1635
    %v1674 = vunpack.c.l.b16 %v1641
    %v1675 = vunpack.c.h.b16 %v1641
    %v1676 = vunpack.c.l.b16 %v1642
    %v1677 = vunpack.c.h.b16 %v1642
    %v1678 = vunpack.c.l.b16 %v1643
    %v1679 = vunpack.c.h.b16 %v1643
    %v1680 = vunpack.c.l.b16 %v1644
    %v1681 = vunpack.c.h.b16 %v1644
    %v1682 = vunpack.c.l.b16 %v1645
    %v1683 = vunpack.c.h.b16 %v1645
    %v1684 = vunpack.c.l.b16 %v1646
    %v1685 = vunpack.c.h.b16 %v1646
    %v1686 = vunpack.c.l.b16 %v1647
    %v1687 = vunpack.c.h.b16 %v1647
    %v1688 = vunpack.c.l.b16 %v1648
    %v1689 = vunpack.c.h.b16 %v1648
    %v1690 = vunpack.c.l.b16 %v1649
    %v1691 = vunpack.c.h.b16 %v1649
    %v1692 = vunpack.c.l.b16 %v1650
    %v1693 = vunpack.c.h.b16 %v1650
    %v1694 = vunpack.c.l.b16 %v1651
    %v1695 = vunpack.c.h.b16 %v1651
    %v1696 = vunpack.c.l.b16 %v1652
    %v1697 = vunpack.c.h.b16 %v1652
    %v1698 = vunpack.c.l.b16 %v1653
    %v1699 = vunpack.c.h.b16 %v1653
    %v1700 = vunpack.c.l.b16 %v1654
    %v1701 = vunpack.c.h.b16 %v1654
    %v1702 = vunpack.c.l.b16 %v1655
    %v1703 = vunpack.c.h.b16 %v1655
    %v1704 = vunpack.c.l.b16 %v1656
    %v1705 = vunpack.c.h.b16 %v1656
    %v1706 = vpack.c.b16 %v1676, %v1674
    %v1707 = vpack.c.b16 %v1677, %v1675
    %v1708 = vpack.c.b16 %v1680, %v1678
    %v1709 = vpack.c.b16 %v1681, %v1679
    %v1710 = vpack.c.b16 %v1684, %v1682
    %v1711 = vpack.c.b16 %v1685, %v1683
    %v1712 = vpack.c.b16 %v1688, %v1686
    %v1713 = vpack.c.b16 %v1689, %v1687
    %v1714 = vpack.c.b16 %v1692, %v1690
    %v1715 = vpack.c.b16 %v1693, %v1691
    %v1716 = vpack.c.b16 %v1696, %v1694
    %v1717 = vpack.c.b16 %v1697, %v1695
    %v1718 = vpack.c.b16 %v1700, %v1698
    %v1719 = vpack.c.b16 %v1701, %v1699
    %v1720 = vpack.c.b16 %v1704, %v1702
    %v1721 = vpack.c.b16 %v1705, %v1703
    %1738 = vmatprep.subr.bf16.mxu0 %v1707
    %1739 = vmatpush1.bf16.msra.mxu0 %v1706
    %1740 = vmatprep.subr.bf16.mxu0 %v1709
    %1741 = vmatpush1.bf16.msra.mxu0 %v1708
    %1742 = vmatprep.subr.bf16.mxu0 %v1711
    %1743 = vmatpush1.bf16.msra.mxu0 %v1710
    %1744 = vmatprep.subr.bf16.mxu0 %v1713
    %1745 = vmatpush1.bf16.msra.mxu0 %v1712
    %1746 = vmatprep.subr.bf16.mxu0 %v1715
    %1747 = vmatpush1.bf16.msra.mxu0 %v1714
    %1748 = vmatprep.subr.bf16.mxu0 %v1717
    %1749 = vmatpush1.bf16.msra.mxu0 %v1716
    %1750 = vmatprep.subr.bf16.mxu0 %v1719
    %1751 = vmatpush1.bf16.msra.mxu0 %v1718
    %1752 = vmatprep.subr.bf16.mxu0 %v1721
    %1753 = vmatpush1.bf16.msra.mxu0 %v1720
    %1754 = vmatprep.subr.bf16.mxu0 0
    %1755 = vmatpush1.bf16.msra.mxu0 0
    %1756 = vmatprep.subr.bf16.mxu0 0
    %1757 = vmatpush1.bf16.msra.mxu0 0
    %1758 = vmatprep.subr.bf16.mxu0 0
    %1759 = vmatpush1.bf16.msra.mxu0 0
    %1760 = vmatprep.subr.bf16.mxu0 0
    %1761 = vmatpush1.bf16.msra.mxu0 0
    %1762 = vmatprep.subr.bf16.mxu0 0
    %1763 = vmatpush1.bf16.msra.mxu0 0
    %1764 = vmatprep.subr.bf16.mxu0 0
    %1765 = vmatpush1.bf16.msra.mxu0 0
    %1766 = vmatprep.subr.bf16.mxu0 0
    %1767 = vmatpush1.bf16.msra.mxu0 0
    %1768 = vmatprep.subr.bf16.mxu0 0
    %1769 = vmatpush1.bf16.msra.mxu0 0
    %1770 = vmatprep.mubr.bf16.mxu0 0
    %1771 = vmatmul.mubr.bf16.gmra.mrb[0].mxu0 %v1657
    %v1772 = vpop.f32.mrb[0].mxu0
    %v1773 = vadd.f32 0.0, %v1772
    %v1774 = vpop.f32.mrb[0].mxu0
    %v1775 = vadd.f32 0.0, %v1774
    %v1776 = vpop.f32.mrb[0].mxu0
    %v1777 = vpop.f32.mrb[0].mxu0
    %1778 = vdwg.mxu0
    %v1779 = vlaneseq
    %v1780 = vshrl.u32 %v1779, 7
    %v1781 = vsub.s32 5, %v1780
    %v1782 = vrot.slane %v92, %v1781
    %v1783 = vadd.f32 %v1773, %v1782
    %v1784 = vmax.f32 %v1783, 0.0
    %v1785 = vadd.f32 %v1784, %v1775
    %s1786 = scalar_lea.vmem [#allocation7], 512
    %v1787 = vld [vmem:[%s1786] sm:$0xff]
    %v1788 = vld [vmem:[%s1786 + $0x8] sm:$0xff]
    %v1789 = vld [vmem:[%s1786 + $0x10] sm:$0xff]
    %v1790 = vld [vmem:[%s1786 + $0x18] sm:$0xff]
    %v1791 = vld [vmem:[%s1786 + $0x20] sm:$0xff]
    %v1792 = vld [vmem:[%s1786 + $0x28] sm:$0xff]
    %v1793 = vld [vmem:[%s1786 + $0x30] sm:$0xff]
    %v1794 = vld [vmem:[%s1786 + $0x38] sm:$0xff]
    %v1795 = vld [vmem:[%s1786 + $0x40] sm:$0xff]
    %v1796 = vld [vmem:[%s1786 + $0x48] sm:$0xff]
    %v1797 = vld [vmem:[%s1786 + $0x50] sm:$0xff]
    %v1798 = vld [vmem:[%s1786 + $0x58] sm:$0xff]
    %v1799 = vld [vmem:[%s1786 + $0x60] sm:$0xff]
    %v1800 = vld [vmem:[%s1786 + $0x68] sm:$0xff]
    %v1801 = vld [vmem:[%s1786 + $0x70] sm:$0xff]
    %v1802 = vld [vmem:[%s1786 + $0x78] sm:$0xff]
    %v1803 = vpack.c.bf16 %v1785, %v1785
    %v1820 = vunpack.c.l.b16 %v1787
    %v1821 = vunpack.c.h.b16 %v1787
    %v1822 = vunpack.c.l.b16 %v1788
    %v1823 = vunpack.c.h.b16 %v1788
    %v1824 = vunpack.c.l.b16 %v1789
    %v1825 = vunpack.c.h.b16 %v1789
    %v1826 = vunpack.c.l.b16 %v1790
    %v1827 = vunpack.c.h.b16 %v1790
    %v1828 = vunpack.c.l.b16 %v1791
    %v1829 = vunpack.c.h.b16 %v1791
    %v1830 = vunpack.c.l.b16 %v1792
    %v1831 = vunpack.c.h.b16 %v1792
    %v1832 = vunpack.c.l.b16 %v1793
    %v1833 = vunpack.c.h.b16 %v1793
    %v1834 = vunpack.c.l.b16 %v1794
    %v1835 = vunpack.c.h.b16 %v1794
    %v1836 = vunpack.c.l.b16 %v1795
    %v1837 = vunpack.c.h.b16 %v1795
    %v1838 = vunpack.c.l.b16 %v1796
    %v1839 = vunpack.c.h.b16 %v1796
    %v1840 = vunpack.c.l.b16 %v1797
    %v1841 = vunpack.c.h.b16 %v1797
    %v1842 = vunpack.c.l.b16 %v1798
    %v1843 = vunpack.c.h.b16 %v1798
    %v1844 = vunpack.c.l.b16 %v1799
    %v1845 = vunpack.c.h.b16 %v1799
    %v1846 = vunpack.c.l.b16 %v1800
    %v1847 = vunpack.c.h.b16 %v1800
    %v1848 = vunpack.c.l.b16 %v1801
    %v1849 = vunpack.c.h.b16 %v1801
    %v1850 = vunpack.c.l.b16 %v1802
    %v1851 = vunpack.c.h.b16 %v1802
    %v1852 = vpack.c.b16 %v1822, %v1820
    %v1853 = vpack.c.b16 %v1823, %v1821
    %v1854 = vpack.c.b16 %v1826, %v1824
    %v1855 = vpack.c.b16 %v1827, %v1825
    %v1856 = vpack.c.b16 %v1830, %v1828
    %v1857 = vpack.c.b16 %v1831, %v1829
    %v1858 = vpack.c.b16 %v1834, %v1832
    %v1859 = vpack.c.b16 %v1835, %v1833
    %v1860 = vpack.c.b16 %v1838, %v1836
    %v1861 = vpack.c.b16 %v1839, %v1837
    %v1862 = vpack.c.b16 %v1842, %v1840
    %v1863 = vpack.c.b16 %v1843, %v1841
    %v1864 = vpack.c.b16 %v1846, %v1844
    %v1865 = vpack.c.b16 %v1847, %v1845
    %v1866 = vpack.c.b16 %v1850, %v1848
    %v1867 = vpack.c.b16 %v1851, %v1849
    %1884 = vmatprep.subr.bf16.mxu0 %v1853
    %1885 = vmatpush1.bf16.msra.mxu0 %v1852
    %1886 = vmatprep.subr.bf16.mxu0 %v1855
    %1887 = vmatpush1.bf16.msra.mxu0 %v1854
    %1888 = vmatprep.subr.bf16.mxu0 %v1857
    %1889 = vmatpush1.bf16.msra.mxu0 %v1856
    %1890 = vmatprep.subr.bf16.mxu0 %v1859
    %1891 = vmatpush1.bf16.msra.mxu0 %v1858
    %1892 = vmatprep.subr.bf16.mxu0 %v1861
    %1893 = vmatpush1.bf16.msra.mxu0 %v1860
    %1894 = vmatprep.subr.bf16.mxu0 %v1863
    %1895 = vmatpush1.bf16.msra.mxu0 %v1862
    %1896 = vmatprep.subr.bf16.mxu0 %v1865
    %1897 = vmatpush1.bf16.msra.mxu0 %v1864
    %1898 = vmatprep.subr.bf16.mxu0 %v1867
    %1899 = vmatpush1.bf16.msra.mxu0 %v1866
    %1900 = vmatprep.subr.bf16.mxu0 0
    %1901 = vmatpush1.bf16.msra.mxu0 0
    %1902 = vmatprep.subr.bf16.mxu0 0
    %1903 = vmatpush1.bf16.msra.mxu0 0
    %1904 = vmatprep.subr.bf16.mxu0 0
    %1905 = vmatpush1.bf16.msra.mxu0 0
    %1906 = vmatprep.subr.bf16.mxu0 0
    %1907 = vmatpush1.bf16.msra.mxu0 0
    %1908 = vmatprep.subr.bf16.mxu0 0
    %1909 = vmatpush1.bf16.msra.mxu0 0
    %1910 = vmatprep.subr.bf16.mxu0 0
    %1911 = vmatpush1.bf16.msra.mxu0 0
    %1912 = vmatprep.subr.bf16.mxu0 0
    %1913 = vmatpush1.bf16.msra.mxu0 0
    %1914 = vmatprep.subr.bf16.mxu0 0
    %1915 = vmatpush1.bf16.msra.mxu0 0
    %1916 = vmatprep.mubr.bf16.mxu0 0
    %1917 = vmatmul.mubr.bf16.gmra.mrb[0].mxu0 %v1803
    %v1918 = vpop.f32.mrb[0].mxu0
    %v1919 = vadd.f32 0.0, %v1918
    %v1920 = vpop.f32.mrb[0].mxu0
    %v1921 = vadd.f32 0.0, %v1920
    %v1922 = vpop.f32.mrb[0].mxu0
    %v1923 = vpop.f32.mrb[0].mxu0
    %1924 = vdwg.mxu0
    %v1925 = vlaneseq
    %v1926 = vshrl.u32 %v1925, 7
    %v1927 = vsub.s32 6, %v1926
    %v1928 = vrot.slane %v92, %v1927
    %v1929 = vadd.f32 %v1919, %v1928
    %v1930 = vmax.f32 %v1929, 0.0
    %v1931 = vadd.f32 %v1930, %v1921
    %s1932 = scalar_lea.vmem [#allocation7], 640
    %v1933 = vld [vmem:[%s1932] sm:$0xff]
    %v1934 = vld [vmem:[%s1932 + $0x8] sm:$0xff]
    %v1935 = vld [vmem:[%s1932 + $0x10] sm:$0xff]
    %v1936 = vld [vmem:[%s1932 + $0x18] sm:$0xff]
    %v1937 = vld [vmem:[%s1932 + $0x20] sm:$0xff]
    %v1938 = vld [vmem:[%s1932 + $0x28] sm:$0xff]
    %v1939 = vld [vmem:[%s1932 + $0x30] sm:$0xff]
    %v1940 = vld [vmem:[%s1932 + $0x38] sm:$0xff]
    %v1941 = vld [vmem:[%s1932 + $0x40] sm:$0xff]
    %v1942 = vld [vmem:[%s1932 + $0x48] sm:$0xff]
    %v1943 = vld [vmem:[%s1932 + $0x50] sm:$0xff]
    %v1944 = vld [vmem:[%s1932 + $0x58] sm:$0xff]
    %v1945 = vld [vmem:[%s1932 + $0x60] sm:$0xff]
    %v1946 = vld [vmem:[%s1932 + $0x68] sm:$0xff]
    %v1947 = vld [vmem:[%s1932 + $0x70] sm:$0xff]
    %v1948 = vld [vmem:[%s1932 + $0x78] sm:$0xff]
    %v1949 = vpack.c.bf16 %v1931, %v1931
    %v1966 = vunpack.c.l.b16 %v1933
    %v1967 = vunpack.c.h.b16 %v1933
    %v1968 = vunpack.c.l.b16 %v1934
    %v1969 = vunpack.c.h.b16 %v1934
    %v1970 = vunpack.c.l.b16 %v1935
    %v1971 = vunpack.c.h.b16 %v1935
    %v1972 = vunpack.c.l.b16 %v1936
    %v1973 = vunpack.c.h.b16 %v1936
    %v1974 = vunpack.c.l.b16 %v1937
    %v1975 = vunpack.c.h.b16 %v1937
    %v1976 = vunpack.c.l.b16 %v1938
    %v1977 = vunpack.c.h.b16 %v1938
    %v1978 = vunpack.c.l.b16 %v1939
    %v1979 = vunpack.c.h.b16 %v1939
    %v1980 = vunpack.c.l.b16 %v1940
    %v1981 = vunpack.c.h.b16 %v1940
    %v1982 = vunpack.c.l.b16 %v1941
    %v1983 = vunpack.c.h.b16 %v1941
    %v1984 = vunpack.c.l.b16 %v1942
    %v1985 = vunpack.c.h.b16 %v1942
    %v1986 = vunpack.c.l.b16 %v1943
    %v1987 = vunpack.c.h.b16 %v1943
    %v1988 = vunpack.c.l.b16 %v1944
    %v1989 = vunpack.c.h.b16 %v1944
    %v1990 = vunpack.c.l.b16 %v1945
    %v1991 = vunpack.c.h.b16 %v1945
    %v1992 = vunpack.c.l.b16 %v1946
    %v1993 = vunpack.c.h.b16 %v1946
    %v1994 = vunpack.c.l.b16 %v1947
    %v1995 = vunpack.c.h.b16 %v1947
    %v1996 = vunpack.c.l.b16 %v1948
    %v1997 = vunpack.c.h.b16 %v1948
    %v1998 = vpack.c.b16 %v1968, %v1966
    %v1999 = vpack.c.b16 %v1969, %v1967
    %v2000 = vpack.c.b16 %v1972, %v1970
    %v2001 = vpack.c.b16 %v1973, %v1971
    %v2002 = vpack.c.b16 %v1976, %v1974
    %v2003 = vpack.c.b16 %v1977, %v1975
    %v2004 = vpack.c.b16 %v1980, %v1978
    %v2005 = vpack.c.b16 %v1981, %v1979
    %v2006 = vpack.c.b16 %v1984, %v1982
    %v2007 = vpack.c.b16 %v1985, %v1983
    %v2008 = vpack.c.b16 %v1988, %v1986
    %v2009 = vpack.c.b16 %v1989, %v1987
    %v2010 = vpack.c.b16 %v1992, %v1990
    %v2011 = vpack.c.b16 %v1993, %v1991
    %v2012 = vpack.c.b16 %v1996, %v1994
    %v2013 = vpack.c.b16 %v1997, %v1995
    %2030 = vmatprep.subr.bf16.mxu0 %v1999
    %2031 = vmatpush1.bf16.msra.mxu0 %v1998
    %2032 = vmatprep.subr.bf16.mxu0 %v2001
    %2033 = vmatpush1.bf16.msra.mxu0 %v2000
    %2034 = vmatprep.subr.bf16.mxu0 %v2003
    %2035 = vmatpush1.bf16.msra.mxu0 %v2002
    %2036 = vmatprep.subr.bf16.mxu0 %v2005
    %2037 = vmatpush1.bf16.msra.mxu0 %v2004
    %2038 = vmatprep.subr.bf16.mxu0 %v2007
    %2039 = vmatpush1.bf16.msra.mxu0 %v2006
    %2040 = vmatprep.subr.bf16.mxu0 %v2009
    %2041 = vmatpush1.bf16.msra.mxu0 %v2008
    %2042 = vmatprep.subr.bf16.mxu0 %v2011
    %2043 = vmatpush1.bf16.msra.mxu0 %v2010
    %2044 = vmatprep.subr.bf16.mxu0 %v2013
    %2045 = vmatpush1.bf16.msra.mxu0 %v2012
    %2046 = vmatprep.subr.bf16.mxu0 0
    %2047 = vmatpush1.bf16.msra.mxu0 0
    %2048 = vmatprep.subr.bf16.mxu0 0
    %2049 = vmatpush1.bf16.msra.mxu0 0
    %2050 = vmatprep.subr.bf16.mxu0 0
    %2051 = vmatpush1.bf16.msra.mxu0 0
    %2052 = vmatprep.subr.bf16.mxu0 0
    %2053 = vmatpush1.bf16.msra.mxu0 0
    %2054 = vmatprep.subr.bf16.mxu0 0
    %2055 = vmatpush1.bf16.msra.mxu0 0
    %2056 = vmatprep.subr.bf16.mxu0 0
    %2057 = vmatpush1.bf16.msra.mxu0 0
    %2058 = vmatprep.subr.bf16.mxu0 0
    %2059 = vmatpush1.bf16.msra.mxu0 0
    %2060 = vmatprep.subr.bf16.mxu0 0
    %2061 = vmatpush1.bf16.msra.mxu0 0
    %2062 = vmatprep.mubr.bf16.mxu0 0
    %2063 = vmatmul.mubr.bf16.gmra.mrb[0].mxu0 %v1949
    %v2064 = vpop.f32.mrb[0].mxu0
    %v2065 = vadd.f32 0.0, %v2064
    %v2066 = vpop.f32.mrb[0].mxu0
    %v2067 = vadd.f32 0.0, %v2066
    %v2068 = vpop.f32.mrb[0].mxu0
    %v2069 = vpop.f32.mrb[0].mxu0
    %2070 = vdwg.mxu0
    %v2071 = vlaneseq
    %v2072 = vshrl.u32 %v2071, 7
    %v2073 = vsub.s32 7, %v2072
    %v2074 = vrot.slane %v92, %v2073
    %v2075 = vadd.f32 %v2065, %v2074
    %v2076 = vmax.f32 %v2075, 0.0
    %v2077 = vadd.f32 %v2076, %v2067
    %s2078 = scalar_lea.vmem [#allocation5], 128
    %v2079 = vld [vmem:[%s2078] sm:$0xf]
    %v2080 = vld [vmem:[%s2078 + $0x4] sm:$0xf]
    %v2081 = vld [vmem:[%s2078 + $0x8] sm:$0xf]
    %v2082 = vld [vmem:[%s2078 + $0xc] sm:$0xf]
    %v2083 = vld [vmem:[%s2078 + $0x10] sm:$0xf]
    %v2084 = vld [vmem:[%s2078 + $0x14] sm:$0xf]
    %v2085 = vld [vmem:[%s2078 + $0x18] sm:$0xf]
    %v2086 = vld [vmem:[%s2078 + $0x1c] sm:$0xf]
    %v2087 = vld [vmem:[%s2078 + $0x20] sm:$0xf]
    %v2088 = vld [vmem:[%s2078 + $0x24] sm:$0xf]
    %v2089 = vld [vmem:[%s2078 + $0x28] sm:$0xf]
    %v2090 = vld [vmem:[%s2078 + $0x2c] sm:$0xf]
    %v2091 = vld [vmem:[%s2078 + $0x30] sm:$0xf]
    %v2092 = vld [vmem:[%s2078 + $0x34] sm:$0xf]
    %v2093 = vld [vmem:[%s2078 + $0x38] sm:$0xf]
    %v2094 = vld [vmem:[%s2078 + $0x3c] sm:$0xf]
    %v2095 = vpack.c.bf16 %v2077, %v2077
    %v2096 = vlaneseq
    %v2097 = vshrl.u32 %v2096, 7
    %v2098 = vsub.s32 0, %v2097
    %v2099 = vrot.slane %v93, %v2098
    %v2116 = vunpack.c.l.b16 %v2079
    %v2117 = vunpack.c.l.b16 %v2080
    %v2118 = vunpack.c.l.b16 %v2081
    %v2119 = vunpack.c.l.b16 %v2082
    %v2120 = vunpack.c.l.b16 %v2083
    %v2121 = vunpack.c.l.b16 %v2084
    %v2122 = vunpack.c.l.b16 %v2085
    %v2123 = vunpack.c.l.b16 %v2086
    %v2124 = vunpack.c.l.b16 %v2087
    %v2125 = vunpack.c.l.b16 %v2088
    %v2126 = vunpack.c.l.b16 %v2089
    %v2127 = vunpack.c.l.b16 %v2090
    %v2128 = vunpack.c.l.b16 %v2091
    %v2129 = vunpack.c.l.b16 %v2092
    %v2130 = vunpack.c.l.b16 %v2093
    %v2131 = vunpack.c.l.b16 %v2094
    %v2132 = vpack.c.b16 %v2117, %v2116
    %v2133 = vpack.c.b16 %v2119, %v2118
    %v2134 = vpack.c.b16 %v2121, %v2120
    %v2135 = vpack.c.b16 %v2123, %v2122
    %v2136 = vpack.c.b16 %v2125, %v2124
    %v2137 = vpack.c.b16 %v2127, %v2126
    %v2138 = vpack.c.b16 %v2129, %v2128
    %v2139 = vpack.c.b16 %v2131, %v2130
    %2148 = vmatprep.subr.bf16.mxu0 0
    %2149 = vmatpush1.bf16.msra.mxu0 %v2132
    %2150 = vmatprep.subr.bf16.mxu0 0
    %2151 = vmatpush1.bf16.msra.mxu0 %v2133
    %2152 = vmatprep.subr.bf16.mxu0 0
    %2153 = vmatpush1.bf16.msra.mxu0 %v2134
    %2154 = vmatprep.subr.bf16.mxu0 0
    %2155 = vmatpush1.bf16.msra.mxu0 %v2135
    %2156 = vmatprep.subr.bf16.mxu0 0
    %2157 = vmatpush1.bf16.msra.mxu0 %v2136
    %2158 = vmatprep.subr.bf16.mxu0 0
    %2159 = vmatpush1.bf16.msra.mxu0 %v2137
    %2160 = vmatprep.subr.bf16.mxu0 0
    %2161 = vmatpush1.bf16.msra.mxu0 %v2138
    %2162 = vmatprep.subr.bf16.mxu0 0
    %2163 = vmatpush1.bf16.msra.mxu0 %v2139
    %2164 = vmatprep.subr.bf16.mxu0 0
    %2165 = vmatpush1.bf16.msra.mxu0 0
    %2166 = vmatprep.subr.bf16.mxu0 0
    %2167 = vmatpush1.bf16.msra.mxu0 0
    %2168 = vmatprep.subr.bf16.mxu0 0
    %2169 = vmatpush1.bf16.msra.mxu0 0
    %2170 = vmatprep.subr.bf16.mxu0 0
    %2171 = vmatpush1.bf16.msra.mxu0 0
    %2172 = vmatprep.subr.bf16.mxu0 0
    %2173 = vmatpush1.bf16.msra.mxu0 0
    %2174 = vmatprep.subr.bf16.mxu0 0
    %2175 = vmatpush1.bf16.msra.mxu0 0
    %2176 = vmatprep.subr.bf16.mxu0 0
    %2177 = vmatpush1.bf16.msra.mxu0 0
    %2178 = vmatprep.subr.bf16.mxu0 0
    %2179 = vmatpush1.bf16.msra.mxu0 0
    %2180 = vmatprep.mubr.bf16.mxu0 0
    %2181 = vmatmul.mubr.bf16.gmra.mrb[0].mxu0 %v2095
    %v2182 = vpop.f32.mrb[0].mxu0
    %v2183 = vadd.f32 %v2099, %v2182
    %v2184 = vpop.f32.mrb[0].mxu0
    %v2185 = vpop.f32.mrb[0].mxu0
    %v2186 = vpop.f32.mrb[0].mxu0
    %2187 = vdwg.mxu0
    %2188 = vst [vmem:[#allocation14] sm:$0xff] %v2183
    // Predicated region
    $region42: #{tpu_custom_call.1} parent=1 // pred_check
      _
    $region43: #{tpu_custom_call.1} parent=1 // pred_check_branch
      %2190 = sbr.rel (0) target = $region45
    $region44: #{tpu_custom_call.1} parent=1 // pred_region
      %s2192 = ssub.s32 128, 128
      %2193 = vsyncadd [#allocation4], %s2192
      %s2195 = sshll.u32 [#allocation11], 4
      %s2196 = int_to_ptr.vmem [resolvable:$true] %s2195
      %2198 = dma.vmem_to_hbm [thread:$0]  %s2196, 128, %s5, [#allocation4]
    $region45: #{tpu_custom_call.1} parent=1 // pred_fallthru
      _
    // Predicated region
    $region46: #{tpu_custom_call.1} parent=1 // pred_check
      _
    $region47: #{tpu_custom_call.1} parent=1 // pred_check_branch
      %2200 = sbr.rel (0) target = $region49
    $region48: #{tpu_custom_call.1} parent=1 // pred_region
      %s2202 = ssub.s32 256, 256
      %2203 = vsyncadd [#allocation13], %s2202
      %s2205 = sshll.u32 [#allocation12], 4
      %s2206 = int_to_ptr.vmem [resolvable:$true] %s2205
      %2208 = dma.vmem_to_hbm [thread:$0]  %s2206, 256, %s6, [#allocation13]
    $region49: #{tpu_custom_call.1} parent=1 // pred_fallthru
      _
    // Predicated region
    $region50: #{tpu_custom_call.1} parent=1 // pred_check
      _
    $region51: #{tpu_custom_call.1} parent=1 // pred_check_branch
      %2210 = sbr.rel (0) target = $region53
    $region52: #{tpu_custom_call.1} parent=1 // pred_region
      %s2212 = ssub.s32 128, 128
      %2213 = vsyncadd [#allocation13], %s2212
      %s2215 = sshll.u32 [#allocation14], 4
      %s2216 = int_to_ptr.vmem [resolvable:$true] %s2215
      %2218 = dma.vmem_to_hbm [thread:$0]  %s2216, 128, %s7, [#allocation13]
    $region53: #{tpu_custom_call.1} parent=1 // pred_fallthru
      _
    // Predicated region
    $region54: #{tpu_custom_call.1} parent=1 // pred_check
      _
    $region55: #{tpu_custom_call.1} parent=1 // pred_check_branch
      %2220 = sbr.rel (0) target = $region57
    $region56: #{tpu_custom_call.1} parent=1 // pred_region
      %2221 = dma.done [#allocation4], 128
    $region57: #{tpu_custom_call.1} parent=1 // pred_fallthru
      _
    // Predicated region
    $region58: #{tpu_custom_call.1} parent=1 // pred_check
      _
    $region59: #{tpu_custom_call.1} parent=1 // pred_check_branch
      %2223 = sbr.rel (0) target = $region61
    $region60: #{tpu_custom_call.1} parent=1 // pred_region
      %2224 = dma.done [#allocation13], 256
    $region61: #{tpu_custom_call.1} parent=1 // pred_fallthru
      _
    // Predicated region
    $region62: #{tpu_custom_call.1} parent=1 // pred_check
      _
    $region63: #{tpu_custom_call.1} parent=1 // pred_check_branch
      %2226 = sbr.rel (0) target = $region65
    $region64: #{tpu_custom_call.1} parent=1 // pred_region
      %2227 = dma.done [#allocation13], 128
    $region65: #{tpu_custom_call.1} parent=1 // pred_fallthru
      _
    %2228 = vsyncpa [#allocation3], 1
    %2229 = vsyncpa [#allocation6], 1
    %2230 = vsyncpa [#allocation9], 1
    %2231 = vsyncpa [#allocation4], 1
    %2232 = vsyncpa [#allocation13], 1

</llo_original>
